<compile_context>
chip_gen: v6e
topology: v6e:2x2x1
jax: 0.10.0
libtpu: 0.0.40
codegen_flags: <defaults>
</compile_context>

<pallas_src>
import functools

import jax
import jax.numpy as jnp
from jax.experimental import pallas as pl
from jax.experimental.pallas import tpu as pltpu

LANE = 128
SUBLANE = 8
TILE = SUBLANE * LANE            # 1024 elements = one (8, 128) tile
CHUNK_ROWS = 256                 # inner-loop slice: 256x128 f32 = 128 KiB / operand
MIN_PALLAS_ELEMS = 64 * TILE     # below this, use the fused XLA expression


def _dice_partial_kernel(p_ref, t_ref, inter_ref, denom_ref):
    """Accumulate lane-shaped partial sums of p*t and p+t.

    Grid is (num_shards, blocks_per_shard); axis 1 is the sequential
    accumulation axis ("arbitrary"), axis 0 ("parallel") selects a per-shard
    accumulator block (used to split rows across TensorCores on v7x).
    """
    @pl.when(pl.program_id(1) == 0)
    def _():
        inter_ref[...] = jnp.zeros_like(inter_ref)
        denom_ref[...] = jnp.zeros_like(denom_ref)

    block_rows = p_ref.shape[0]                       # static
    chunk_rows = min(CHUNK_ROWS, block_rows)          # static, multiple of 8
    n_chunks = block_rows // chunk_rows               # static
    rem_rows = block_rows - n_chunks * chunk_rows     # static, multiple of 8

    def fold(p, t, inter_acc, denom_acc):
        tiles = p.shape[0] // SUBLANE
        p = p.astype(jnp.float32)
        t = t.astype(jnp.float32)
        # Fold whole (8,128) tiles into the (8,128) accumulators: pure VPU
        # elementwise work, no cross-lane (XLU) ops in the hot loop.
        inter_acc = inter_acc + jnp.sum(
            (p * t).reshape(tiles, SUBLANE, LANE), axis=0)
        denom_acc = denom_acc + jnp.sum(
            (p + t).reshape(tiles, SUBLANE, LANE), axis=0)
        return inter_acc, denom_acc

    def body(c, carry):
        inter_acc, denom_acc = carry
        r0 = pl.multiple_of(c * chunk_rows, chunk_rows)
        p = p_ref[pl.ds(r0, chunk_rows), :]
        t = t_ref[pl.ds(r0, chunk_rows), :]
        return fold(p, t, inter_acc, denom_acc)

    zeros = jnp.zeros((SUBLANE, LANE), jnp.float32)
    inter_acc, denom_acc = jax.lax.fori_loop(
        0, n_chunks, body, (zeros, zeros), unroll=min(8, n_chunks))

    if rem_rows:
        p = p_ref[pl.ds(n_chunks * chunk_rows, rem_rows), :]
        t = t_ref[pl.ds(n_chunks * chunk_rows, rem_rows), :]
        inter_acc, denom_acc = fold(p, t, inter_acc, denom_acc)

    inter_ref[0, :, :] = inter_ref[0, :, :] + inter_acc
    denom_ref[0, :, :] = denom_ref[0, :, :] + denom_acc


def _dice_partial_sums(p2d, t2d, block_rows, num_shards, blocks_per_shard,
                       vmem_limit_bytes=None):
    """Run the Pallas reduction over the first num_shards*blocks_per_shard
    blocks (of block_rows rows each) of the (rows, 128) arrays."""
    in_spec = pl.BlockSpec(
        (block_rows, LANE),
        lambda c, i: (c * blocks_per_shard + i, 0))
    out_spec = pl.BlockSpec((1, SUBLANE, LANE), lambda c, i: (c, 0, 0))

    inter_part, denom_part = pl.pallas_call(
        _dice_partial_kernel,
        out_shape=(
            jax.ShapeDtypeStruct((num_shards, SUBLANE, LANE), jnp.float32),
            jax.ShapeDtypeStruct((num_shards, SUBLANE, LANE), jnp.float32),
        ),
        grid_spec=pltpu.PrefetchScalarGridSpec(
            num_scalar_prefetch=0,
            grid=(num_shards, blocks_per_shard),
            in_specs=[in_spec, in_spec],
            out_specs=(out_spec, out_spec),
        ),
        compiler_params=pltpu.CompilerParams(
            dimension_semantics=("parallel", "arbitrary"),
            vmem_limit_bytes=vmem_limit_bytes,
        ),
    )(p2d, t2d)

    return jnp.sum(inter_part), jnp.sum(denom_part)


@functools.lru_cache(maxsize=1)
def _is_v7x_like():
    """Best-effort chip detection; conservative (False) on any failure.

    v7x TensorCores have 64 MiB VMEM (v5e/v6e: 128 MiB), ~3.2 TB/s HBM and
    2 TCs/chip -> use larger blocks, raise the scoped VMEM limit and shard the
    row range across the cores.  Misdetection is safe: both settings are
    correct on every chip, only throughput differs.
    """
    try:
        info = pltpu.get_tpu_info()
        vmem = int(getattr(info, "vmem_capacity_bytes", 128 * 1024 * 1024))
    except Exception:
        return False
    return vmem == 64 * 1024 * 1024


def dice_loss(preds, targets, smooth=1.0, num_shards=None):
    """Pallas TPU implementation of DiceLoss.forward. Returns a scalar f32."""
    assert preds.shape == targets.shape

    # Keep native dtype; the kernel upcasts per chunk (halves HBM traffic for
    # bf16 inputs and avoids an extra whole-array XLA cast pass).
    p_flat = preds.reshape(-1)
    t_flat = targets.reshape(-1)
    n = p_flat.shape[0]
    smooth = jnp.float32(smooth)

    # Tiny inputs: a single fused XLA reduce beats the pallas_call launch cost.
    if n < MIN_PALLAS_ELEMS:
        p = p_flat.astype(jnp.float32)
        t = t_flat.astype(jnp.float32)
        inter = jnp.sum(p * t)
        denom = jnp.sum(p) + jnp.sum(t)
        return 1.0 - (2.0 * inter + smooth) / (denom + smooth)

    is_v7x = _is_v7x_like()
    itemsize = jnp.dtype(p_flat.dtype).itemsize
    n_tiles = n // TILE

    # Dtype-aware block size: ~1 MiB of HBM traffic per input block on
    # v5e/v6e, ~4 MiB on v7x (per-step overhead amortization at 3.2 TB/s).
    target_block_bytes = (4 if is_v7x else 1) * 1024 * 1024
    tiles_per_block = max(1, target_block_bytes // (TILE * itemsize))
    if not is_v7x:
        tiles_per_block = min(tiles_per_block, 512)   # <= (4096, 128) on v5e
    tiles_per_block = min(tiles_per_block, n_tiles)
    block_rows = tiles_per_block * SUBLANE

    n_blocks = n_tiles // tiles_per_block
    if num_shards is None:
        num_shards = 2 if is_v7x else 1               # 2 TensorCores on v7x
    num_shards = max(1, min(int(num_shards), n_blocks))
    blocks_per_shard = n_blocks // num_shards
    n_blocks_main = blocks_per_shard * num_shards

    vmem_limit = 48 * 1024 * 1024 if is_v7x else None

    # Tile-aligned region (identity slice when n is a multiple of 1024).
    n_aligned = n_tiles * TILE
    rows_total = n_tiles * SUBLANE
    p_al = p_flat if n_aligned == n else jax.lax.slice(p_flat, (0,), (n_aligned,))
    t_al = t_flat if n_aligned == n else jax.lax.slice(t_flat, (0,), (n_aligned,))
    p2d = p_al.reshape(rows_total, LANE)
    t2d = t_al.reshape(rows_total, LANE)

    # Main call covers the first n_blocks_main blocks of the full 2-D arrays
    # (no prefix copy; the grid simply never indexes past them).
    inter, denom = _dice_partial_sums(
        p2d, t2d, block_rows, num_shards, blocks_per_shard, vmem_limit)

    # Leftover whole (8,128) tiles: one extra single-step pallas_call so only
    # the sub-tile remainder (< 1024 elements) hits the XLA tail.
    rows_main = n_blocks_main * block_rows
    rows_left = rows_total - rows_main
    if rows_left > 0:
        p_left = jax.lax.slice(p2d, (rows_main, 0), (rows_total, LANE))
        t_left = jax.lax.slice(t2d, (rows_main, 0), (rows_total, LANE))
        k_i, k_d = _dice_partial_sums(p_left, t_left, rows_left, 1, 1, vmem_limit)
        inter = inter + k_i
        denom = denom + k_d

    # Sub-tile remainder (< 1024 elements): fused XLA reduce, no padding copy.
    if n_aligned < n:
        p_rem = p_flat[n_aligned:].astype(jnp.float32)
        t_rem = t_flat[n_aligned:].astype(jnp.float32)
        inter = inter + jnp.sum(p_rem * t_rem)
        denom = denom + jnp.sum(p_rem) + jnp.sum(t_rem)

    dice_coef = (2.0 * inter + smooth) / (denom + smooth)
    return 1.0 - dice_coef


def dice_loss_ref(preds, targets, smooth=1.0):
    p = preds.reshape(-1).astype(jnp.float32)
    t = targets.reshape(-1).astype(jnp.float32)
    inter = jnp.sum(p * t)
    dice = (2.0 * inter + smooth) / (jnp.sum(p) + jnp.sum(t) + smooth)
    return 1.0 - dice


if __name__ == "__main__":
    key = jax.random.PRNGKey(0)

    def make_inputs(k, shape, dtype):
        k1, k2 = jax.random.split(k)
        preds = jax.nn.sigmoid(jax.random.normal(k1, shape, jnp.float32))
        targets = (jax.random.uniform(k2, shape) > 0.5).astype(jnp.float32)
        return preds.astype(dtype), targets.astype(dtype)

    # Primary small NCHW case (tiny-input XLA bypass), plus cases exercising:
    # multi-step accumulation, the forced 2-shard (v7x-style) grid, bf16
    # dtype-aware block sizing, and the ragged leftover-tiles + sub-tile tail.
    cases = [
        ((2, 4, 16, 16), jnp.float32, None),
        ((2, 4, 256, 256), jnp.float32, None),
        ((2, 4, 256, 256), jnp.float32, 2),
        ((2, 4, 256, 256), jnp.bfloat16, None),
        ((2, 3, 301, 517), jnp.float32, None),
    ]
    for i, (shape, dtype, shards) in enumerate(cases):
        preds, targets = make_inputs(jax.random.fold_in(key, i), shape, dtype)
        loss = jax.block_until_ready(
            dice_loss(preds, targets, smooth=1.0, num_shards=shards))
        ref = jax.block_until_ready(dice_loss_ref(preds, targets, smooth=1.0))
        assert jnp.allclose(loss, ref, rtol=1e-4, atol=1e-5), (
            shape, dtype, shards, loss, ref)

    print("KERNEL_OK")
</pallas_src>

<mosaic_0001>
module attributes {stable_mosaic.version = 11 : i64} {
  func.func @_dice_partial_kernel(%arg0: i32, %arg1: i32, %arg2: memref<2048x128xf32, #tpu.memory_space<vmem>>, %arg3: memref<2048x128xf32, #tpu.memory_space<vmem>>, %arg4: memref<1x8x128xf32, #tpu.memory_space<vmem>>, %arg5: memref<1x8x128xf32, #tpu.memory_space<vmem>>) attributes {dimension_semantics = [#tpu.dimension_semantics<parallel>, #tpu.dimension_semantics<arbitrary>], iteration_bounds = array<i64: 1, 2>, scalar_prefetch = 0 : i64, scratch_operands = 0 : i64, tpu.core_type = #tpu.core_type<tc>, window_params = [{transform_indices = @transform_0, window_bounds = array<i64: 2048, 128>}, {transform_indices = @transform_1, window_bounds = array<i64: 2048, 128>}, {transform_indices = @transform_2, window_bounds = array<i64: 1, 8, 128>}, {transform_indices = @transform_3, window_bounds = array<i64: 1, 8, 128>}]} {
    %c0_i32 = arith.constant 0 : i32
    %0 = arith.cmpi eq, %arg1, %c0_i32 : i32
    %1 = arith.extui %0 : i1 to i32
    %c0_i32_0 = arith.constant 0 : i32
    %2 = arith.cmpi ne, %1, %c0_i32_0 : i32
    scf.if %2 {
      %cst_52 = arith.constant 0.000000e+00 : f32
      %128 = vector.broadcast %cst_52 : f32 to vector<1x8x128xf32>
      %c0_53 = arith.constant 0 : index
      %c0_54 = arith.constant 0 : index
      %c0_55 = arith.constant 0 : index
      %129 = vector.load %arg4[%c0_53, %c0_54, %c0_55] : memref<1x8x128xf32, #tpu.memory_space<vmem>>, vector<1x8x128xf32>
      tpu.vector_store %arg4[%c0_53, %c0_54, %c0_55], %128 {strides = array<i32>} : memref<1x8x128xf32, #tpu.memory_space<vmem>>, vector<1x8x128xf32>,
      %cst_56 = arith.constant 0.000000e+00 : f32
      %130 = vector.broadcast %cst_56 : f32 to vector<1x8x128xf32>
      %c0_57 = arith.constant 0 : index
      %c0_58 = arith.constant 0 : index
      %c0_59 = arith.constant 0 : index
      %131 = vector.load %arg5[%c0_57, %c0_58, %c0_59] : memref<1x8x128xf32, #tpu.memory_space<vmem>>, vector<1x8x128xf32>
      tpu.vector_store %arg5[%c0_57, %c0_58, %c0_59], %130 {strides = array<i32>} : memref<1x8x128xf32, #tpu.memory_space<vmem>>, vector<1x8x128xf32>,
    } else {
    }
    %cst = arith.constant 0.000000e+00 : f32
    %3 = vector.broadcast %cst : f32 to vector<8x128xf32>
    %c0_i32_1 = arith.constant 0 : i32
    %c256_i32 = arith.constant 256 : i32
    %4 = arith.muli %c0_i32_1, %c256_i32 : i32
    %5 = tpu.assume_multiple %4, 256 : i32
    %6 = arith.index_cast %5 : i32 to index
    %c0 = arith.constant 0 : index
    %7 = vector.load %arg2[%6, %c0] : memref<2048x128xf32, #tpu.memory_space<vmem>>, vector<256x128xf32>
    %8 = arith.index_cast %5 : i32 to index
    %c0_2 = arith.constant 0 : index
    %9 = vector.load %arg3[%8, %c0_2] : memref<2048x128xf32, #tpu.memory_space<vmem>>, vector<256x128xf32>
    %10 = arith.mulf %7, %9 : vector<256x128xf32>
    %11 = vector.shape_cast %10 : vector<256x128xf32> to vector<32x8x128xf32>
    %cst_3 = arith.constant dense<0.000000e+00> : vector<8x128xf32>
    %12 = vector.multi_reduction <add>, %11, %cst_3 [0] : vector<32x8x128xf32> to vector<8x128xf32>
    %13 = arith.addf %3, %12 : vector<8x128xf32>
    %14 = arith.addf %7, %9 : vector<256x128xf32>
    %15 = vector.shape_cast %14 : vector<256x128xf32> to vector<32x8x128xf32>
    %cst_4 = arith.constant dense<0.000000e+00> : vector<8x128xf32>
    %16 = vector.multi_reduction <add>, %15, %cst_4 [0] : vector<32x8x128xf32> to vector<8x128xf32>
    %17 = arith.addf %3, %16 : vector<8x128xf32>
    %c1_i32 = arith.constant 1 : i32
    %c256_i32_5 = arith.constant 256 : i32
    %18 = arith.muli %c1_i32, %c256_i32_5 : i32
    %19 = tpu.assume_multiple %18, 256 : i32
    %20 = arith.index_cast %19 : i32 to index
    %c0_6 = arith.constant 0 : index
    %21 = vector.load %arg2[%20, %c0_6] : memref<2048x128xf32, #tpu.memory_space<vmem>>, vector<256x128xf32>
    %22 = arith.index_cast %19 : i32 to index
    %c0_7 = arith.constant 0 : index
    %23 = vector.load %arg3[%22, %c0_7] : memref<2048x128xf32, #tpu.memory_space<vmem>>, vector<256x128xf32>
    %24 = arith.mulf %21, %23 : vector<256x128xf32>
    %25 = vector.shape_cast %24 : vector<256x128xf32> to vector<32x8x128xf32>
    %cst_8 = arith.constant dense<0.000000e+00> : vector<8x128xf32>
    %26 = vector.multi_reduction <add>, %25, %cst_8 [0] : vector<32x8x128xf32> to vector<8x128xf32>
    %27 = arith.addf %13, %26 : vector<8x128xf32>
    %28 = arith.addf %21, %23 : vector<256x128xf32>
    %29 = vector.shape_cast %28 : vector<256x128xf32> to vector<32x8x128xf32>
    %cst_9 = arith.constant dense<0.000000e+00> : vector<8x128xf32>
    %30 = vector.multi_reduction <add>, %29, %cst_9 [0] : vector<32x8x128xf32> to vector<8x128xf32>
    %31 = arith.addf %17, %30 : vector<8x128xf32>
    %c2_i32 = arith.constant 2 : i32
    %c256_i32_10 = arith.constant 256 : i32
    %32 = arith.muli %c2_i32, %c256_i32_10 : i32
    %33 = tpu.assume_multiple %32, 256 : i32
    %34 = arith.index_cast %33 : i32 to index
    %c0_11 = arith.constant 0 : index
    %35 = vector.load %arg2[%34, %c0_11] : memref<2048x128xf32, #tpu.memory_space<vmem>>, vector<256x128xf32>
    %36 = arith.index_cast %33 : i32 to index
    %c0_12 = arith.constant 0 : index
    %37 = vector.load %arg3[%36, %c0_12] : memref<2048x128xf32, #tpu.memory_space<vmem>>, vector<256x128xf32>
    %38 = arith.mulf %35, %37 : vector<256x128xf32>
    %39 = vector.shape_cast %38 : vector<256x128xf32> to vector<32x8x128xf32>
    %cst_13 = arith.constant dense<0.000000e+00> : vector<8x128xf32>
    %40 = vector.multi_reduction <add>, %39, %cst_13 [0] : vector<32x8x128xf32> to vector<8x128xf32>
    %41 = arith.addf %27, %40 : vector<8x128xf32>
    %42 = arith.addf %35, %37 : vector<256x128xf32>
    %43 = vector.shape_cast %42 : vector<256x128xf32> to vector<32x8x128xf32>
    %cst_14 = arith.constant dense<0.000000e+00> : vector<8x128xf32>
    %44 = vector.multi_reduction <add>, %43, %cst_14 [0] : vector<32x8x128xf32> to vector<8x128xf32>
    %45 = arith.addf %31, %44 : vector<8x128xf32>
    %c3_i32 = arith.constant 3 : i32
    %c256_i32_15 = arith.constant 256 : i32
    %46 = arith.muli %c3_i32, %c256_i32_15 : i32
    %47 = tpu.assume_multiple %46, 256 : i32
    %48 = arith.index_cast %47 : i32 to index
    %c0_16 = arith.constant 0 : index
    %49 = vector.load %arg2[%48, %c0_16] : memref<2048x128xf32, #tpu.memory_space<vmem>>, vector<256x128xf32>
    %50 = arith.index_cast %47 : i32 to index
    %c0_17 = arith.constant 0 : index
    %51 = vector.load %arg3[%50, %c0_17] : memref<2048x128xf32, #tpu.memory_space<vmem>>, vector<256x128xf32>
    %52 = arith.mulf %49, %51 : vector<256x128xf32>
    %53 = vector.shape_cast %52 : vector<256x128xf32> to vector<32x8x128xf32>
    %cst_18 = arith.constant dense<0.000000e+00> : vector<8x128xf32>
    %54 = vector.multi_reduction <add>, %53, %cst_18 [0] : vector<32x8x128xf32> to vector<8x128xf32>
    %55 = arith.addf %41, %54 : vector<8x128xf32>
    %56 = arith.addf %49, %51 : vector<256x128xf32>
    %57 = vector.shape_cast %56 : vector<256x128xf32> to vector<32x8x128xf32>
    %cst_19 = arith.constant dense<0.000000e+00> : vector<8x128xf32>
    %58 = vector.multi_reduction <add>, %57, %cst_19 [0] : vector<32x8x128xf32> to vector<8x128xf32>
    %59 = arith.addf %45, %58 : vector<8x128xf32>
    %c4_i32 = arith.constant 4 : i32
    %c256_i32_20 = arith.constant 256 : i32
    %60 = arith.muli %c4_i32, %c256_i32_20 : i32
    %61 = tpu.assume_multiple %60, 256 : i32
    %62 = arith.index_cast %61 : i32 to index
    %c0_21 = arith.constant 0 : index
    %63 = vector.load %arg2[%62, %c0_21] : memref<2048x128xf32, #tpu.memory_space<vmem>>, vector<256x128xf32>
    %64 = arith.index_cast %61 : i32 to index
    %c0_22 = arith.constant 0 : index
    %65 = vector.load %arg3[%64, %c0_22] : memref<2048x128xf32, #tpu.memory_space<vmem>>, vector<256x128xf32>
    %66 = arith.mulf %63, %65 : vector<256x128xf32>
    %67 = vector.shape_cast %66 : vector<256x128xf32> to vector<32x8x128xf32>
    %cst_23 = arith.constant dense<0.000000e+00> : vector<8x128xf32>
    %68 = vector.multi_reduction <add>, %67, %cst_23 [0] : vector<32x8x128xf32> to vector<8x128xf32>
    %69 = arith.addf %55, %68 : vector<8x128xf32>
    %70 = arith.addf %63, %65 : vector<256x128xf32>
    %71 = vector.shape_cast %70 : vector<256x128xf32> to vector<32x8x128xf32>
    %cst_24 = arith.constant dense<0.000000e+00> : vector<8x128xf32>
    %72 = vector.multi_reduction <add>, %71, %cst_24 [0] : vector<32x8x128xf32> to vector<8x128xf32>
    %73 = arith.addf %59, %72 : vector<8x128xf32>
    %c5_i32 = arith.constant 5 : i32
    %c256_i32_25 = arith.constant 256 : i32
    %74 = arith.muli %c5_i32, %c256_i32_25 : i32
    %75 = tpu.assume_multiple %74, 256 : i32
    %76 = arith.index_cast %75 : i32 to index
    %c0_26 = arith.constant 0 : index
    %77 = vector.load %arg2[%76, %c0_26] : memref<2048x128xf32, #tpu.memory_space<vmem>>, vector<256x128xf32>
    %78 = arith.index_cast %75 : i32 to index
    %c0_27 = arith.constant 0 : index
    %79 = vector.load %arg3[%78, %c0_27] : memref<2048x128xf32, #tpu.memory_space<vmem>>, vector<256x128xf32>
    %80 = arith.mulf %77, %79 : vector<256x128xf32>
    %81 = vector.shape_cast %80 : vector<256x128xf32> to vector<32x8x128xf32>
    %cst_28 = arith.constant dense<0.000000e+00> : vector<8x128xf32>
    %82 = vector.multi_reduction <add>, %81, %cst_28 [0] : vector<32x8x128xf32> to vector<8x128xf32>
    %83 = arith.addf %69, %82 : vector<8x128xf32>
    %84 = arith.addf %77, %79 : vector<256x128xf32>
    %85 = vector.shape_cast %84 : vector<256x128xf32> to vector<32x8x128xf32>
    %cst_29 = arith.constant dense<0.000000e+00> : vector<8x128xf32>
    %86 = vector.multi_reduction <add>, %85, %cst_29 [0] : vector<32x8x128xf32> to vector<8x128xf32>
    %87 = arith.addf %73, %86 : vector<8x128xf32>
    %c6_i32 = arith.constant 6 : i32
    %c256_i32_30 = arith.constant 256 : i32
    %88 = arith.muli %c6_i32, %c256_i32_30 : i32
    %89 = tpu.assume_multiple %88, 256 : i32
    %90 = arith.index_cast %89 : i32 to index
    %c0_31 = arith.constant 0 : index
    %91 = vector.load %arg2[%90, %c0_31] : memref<2048x128xf32, #tpu.memory_space<vmem>>, vector<256x128xf32>
    %92 = arith.index_cast %89 : i32 to index
    %c0_32 = arith.constant 0 : index
    %93 = vector.load %arg3[%92, %c0_32] : memref<2048x128xf32, #tpu.memory_space<vmem>>, vector<256x128xf32>
    %94 = arith.mulf %91, %93 : vector<256x128xf32>
    %95 = vector.shape_cast %94 : vector<256x128xf32> to vector<32x8x128xf32>
    %cst_33 = arith.constant dense<0.000000e+00> : vector<8x128xf32>
    %96 = vector.multi_reduction <add>, %95, %cst_33 [0] : vector<32x8x128xf32> to vector<8x128xf32>
    %97 = arith.addf %83, %96 : vector<8x128xf32>
    %98 = arith.addf %91, %93 : vector<256x128xf32>
    %99 = vector.shape_cast %98 : vector<256x128xf32> to vector<32x8x128xf32>
    %cst_34 = arith.constant dense<0.000000e+00> : vector<8x128xf32>
    %100 = vector.multi_reduction <add>, %99, %cst_34 [0] : vector<32x8x128xf32> to vector<8x128xf32>
    %101 = arith.addf %87, %100 : vector<8x128xf32>
    %c7_i32 = arith.constant 7 : i32
    %c256_i32_35 = arith.constant 256 : i32
    %102 = arith.muli %c7_i32, %c256_i32_35 : i32
    %103 = tpu.assume_multiple %102, 256 : i32
    %104 = arith.index_cast %103 : i32 to index
    %c0_36 = arith.constant 0 : index
    %105 = vector.load %arg2[%104, %c0_36] : memref<2048x128xf32, #tpu.memory_space<vmem>>, vector<256x128xf32>
    %106 = arith.index_cast %103 : i32 to index
    %c0_37 = arith.constant 0 : index
    %107 = vector.load %arg3[%106, %c0_37] : memref<2048x128xf32, #tpu.memory_space<vmem>>, vector<256x128xf32>
    %108 = arith.mulf %105, %107 : vector<256x128xf32>
    %109 = vector.shape_cast %108 : vector<256x128xf32> to vector<32x8x128xf32>
    %cst_38 = arith.constant dense<0.000000e+00> : vector<8x128xf32>
    %110 = vector.multi_reduction <add>, %109, %cst_38 [0] : vector<32x8x128xf32> to vector<8x128xf32>
    %111 = arith.addf %97, %110 : vector<8x128xf32>
    %112 = arith.addf %105, %107 : vector<256x128xf32>
    %113 = vector.shape_cast %112 : vector<256x128xf32> to vector<32x8x128xf32>
    %cst_39 = arith.constant dense<0.000000e+00> : vector<8x128xf32>
    %114 = vector.multi_reduction <add>, %113, %cst_39 [0] : vector<32x8x128xf32> to vector<8x128xf32>
    %115 = arith.addf %101, %114 : vector<8x128xf32>
    %c8_i32 = arith.constant 8 : i32
    %c0_40 = arith.constant 0 : index
    %c0_41 = arith.constant 0 : index
    %c0_42 = arith.constant 0 : index
    %116 = vector.load %arg4[%c0_40, %c0_41, %c0_42] : memref<1x8x128xf32, #tpu.memory_space<vmem>>, vector<1x8x128xf32>
    %117 = vector.shape_cast %116 : vector<1x8x128xf32> to vector<8x128xf32>
    %118 = arith.addf %117, %111 : vector<8x128xf32>
    %c0_43 = arith.constant 0 : index
    %c0_44 = arith.constant 0 : index
    %c0_45 = arith.constant 0 : index
    %119 = vector.load %arg4[%c0_43, %c0_44, %c0_45] : memref<1x8x128xf32, #tpu.memory_space<vmem>>, vector<1x8x128xf32>
    %120 = vector.shape_cast %119 : vector<1x8x128xf32> to vector<8x128xf32>
    %121 = vector.shape_cast %118 : vector<8x128xf32> to vector<1x8x128xf32>
    tpu.vector_store %arg4[%c0_43, %c0_44, %c0_45], %121 {strides = array<i32>} : memref<1x8x128xf32, #tpu.memory_space<vmem>>, vector<1x8x128xf32>,
    %c0_46 = arith.constant 0 : index
    %c0_47 = arith.constant 0 : index
    %c0_48 = arith.constant 0 : index
    %122 = vector.load %arg5[%c0_46, %c0_47, %c0_48] : memref<1x8x128xf32, #tpu.memory_space<vmem>>, vector<1x8x128xf32>
    %123 = vector.shape_cast %122 : vector<1x8x128xf32> to vector<8x128xf32>
    %124 = arith.addf %123, %115 : vector<8x128xf32>
    %c0_49 = arith.constant 0 : index
    %c0_50 = arith.constant 0 : index
    %c0_51 = arith.constant 0 : index
    %125 = vector.load %arg5[%c0_49, %c0_50, %c0_51] : memref<1x8x128xf32, #tpu.memory_space<vmem>>, vector<1x8x128xf32>
    %126 = vector.shape_cast %125 : vector<1x8x128xf32> to vector<8x128xf32>
    %127 = vector.shape_cast %124 : vector<8x128xf32> to vector<1x8x128xf32>
    tpu.vector_store %arg5[%c0_49, %c0_50, %c0_51], %127 {strides = array<i32>} : memref<1x8x128xf32, #tpu.memory_space<vmem>>, vector<1x8x128xf32>,
    return
  }
  func.func @transform_0(%arg0: i32, %arg1: i32) -> (i32, i32) {
    %c2_i32 = arith.constant 2 : i32
    %0 = arith.muli %arg0, %c2_i32 : i32
    %1 = arith.addi %0, %arg1 : i32
    %c0_i32 = arith.constant 0 : i32
    %c0_i32_0 = arith.constant 0 : i32
    return %1, %c0_i32 : i32, i32
  }
  func.func @transform_1(%arg0: i32, %arg1: i32) -> (i32, i32) {
    %c2_i32 = arith.constant 2 : i32
    %0 = arith.muli %arg0, %c2_i32 : i32
    %1 = arith.addi %0, %arg1 : i32
    %c0_i32 = arith.constant 0 : i32
    %c0_i32_0 = arith.constant 0 : i32
    return %1, %c0_i32 : i32, i32
  }
  func.func @transform_2(%arg0: i32, %arg1: i32) -> (i32, i32, i32) {
    %c0_i32 = arith.constant 0 : i32
    %c0_i32_0 = arith.constant 0 : i32
    %c0_i32_1 = arith.constant 0 : i32
    return %arg0, %c0_i32, %c0_i32_0 : i32, i32, i32
  }
  func.func @transform_3(%arg0: i32, %arg1: i32) -> (i32, i32, i32) {
    %c0_i32 = arith.constant 0 : i32
    %c0_i32_0 = arith.constant 0 : i32
    %c0_i32_1 = arith.constant 0 : i32
    return %arg0, %c0_i32, %c0_i32_0 : i32, i32, i32
  }
}

</mosaic_0001>

<llo_original>
// kernel: tpu_custom_call.1
$region0: #{tpu_custom_call.1}
  #allocation0 [shape = 'u32[]', space=smem, size = 0x4, offset = 0x4, fixed_abs, tag = 'smem constant byte address 0x4 - core index']
  #allocation1 [shape = 'u32[144,128]{1,0:T(1,128)}', space=vmem, size = 0x12000, scoped, tag = 'internal scratch']
  %s0 = inlined_call_operand.hbm [shape: f32[4096,128], index: 0, kind: input, shape index: {}]
  %s1 = inlined_call_operand.hbm [shape: f32[4096,128], index: 1, kind: input, shape index: {}]
  %s2 = inlined_call_operand.hbm [shape: f32[1,8,128], index: 2, kind: output, shape index: {0}]
  %s3 = inlined_call_operand.hbm [shape: f32[1,8,128], index: 3, kind: output, shape index: {1}]
  %4 = xla_tuple %s2, %s3
  %s5 = sld [smem:[#allocation0]]
  $region61: #{tpu_custom_call.1} parent=0
    _
  %s7 = ssub.s32 1, %s5
  %s8 = scalar_select 0, %s7, %s5
  $region1: #{tpu_custom_call.1} parent=0
    #allocation2 [shape = 'u8[2097152]{0}', space=vmem, size = 0x200000, scoped, tag = 'input window, operand 0']
    #allocation3 [shape = 's32[2]{0}', space=sflag, size = 0x8, scoped, tag = 'scoped memory for tpu_custom_call.1']
    #allocation4 [shape = 's32[2]{0}', space=sflag, size = 0x8, scoped, tag = 'scoped memory for tpu_custom_call.1']
    #allocation5 [shape = 'u8[2097152]{0}', space=vmem, size = 0x200000, scoped, tag = 'input window, operand 1']
    #allocation6 [shape = 's32[2]{0}', space=sflag, size = 0x8, scoped, tag = 'scoped memory for tpu_custom_call.1']
    #allocation7 [shape = 'u8[4096]{0}', space=vmem, size = 0x1000, scoped, tag = 'output window, operand 0, single buffered']
    #allocation8 [shape = 'u8[4096]{0}', space=vmem, size = 0x1000, scoped, tag = 'output window, operand 1, single buffered']
    #allocation9 [shape = 's32[1]{0}', space=sflag, size = 0x4, scoped, tag = 'scoped memory for tpu_custom_call.1']
    %9 = vsyncpa [#allocation3], 0
    %s10 = scalar_lea.sflag [#allocation3], 1
    %11 = vsyncpa %s10, 0
    %12 = vsyncpa [#allocation6], 0
    %s13 = scalar_lea.sflag [#allocation6], 1
    %14 = vsyncpa %s13, 0
    %15 = vsyncpa [#allocation4], 0
    %16 = vsyncpa [#allocation9], 0
    loop: start=0, step=1, limit=4
    $region2: #{tpu_custom_call.1} parent=1 // loop_pre_header
      _
    $region3: #{tpu_custom_call.1} parent=1 // loop_header
      %s18 = sphi 0, %s22
      %p19 = scmp.ge.s32.totalorder %s18, 4
      %s25 = sphi 0, %s37
      %s26 = sphi 0, %s33
      %s27 = sphi 0, %s25
      %s28 = sphi 0, %s26
      %s29 = sphi 0, %s27
      %s30 = sphi 0, %s28
      %s44 = sphi 0, %s46
      %s47 = sphi 0, %s44
      %s48 = sphi 0, %s47
      %s64 = sphi 0, %s48
      %s74 = sphi 0, %s76
      %s77 = sphi 0, %s74
      %s78 = sphi 0, %s77
      %s94 = sphi 0, %s78
      %s100 = sphi 0, %s102
      %s103 = sphi 0, %s100
      %s104 = sphi 0, %s103
      %s120 = sphi 0, %s104
      %s126 = sphi 0, %s128
      %s129 = sphi 0, %s126
      %s130 = sphi 0, %s129
      %s146 = sphi 0, %s130
    $region4: #{tpu_custom_call.1} parent=1 // loop_header_branch
      %21 = sbr.rel (%p19) target = $region8
    $region5: #{tpu_custom_call.1} parent=1 // loop_body
      %s23 = ssub.s32 %s18, 1
      %s24 = ssub.s32 %s18, 2
      %s31 = sadd.s32 1, %s26
      %p32 = scmp.ge.s32.totalorder %s31, 2
      %s33 = scalar_select %p32, 0, %s31
      %s34 = sadd.s32 1, %s25
      %s35 = scalar_select %p32, %s34, %s25
      %p36 = scmp.ge.s32.totalorder %s35, 1
      %s37 = scalar_select %p36, 0, %s35
      %s38 = smul.u32 %s25, 2
      %s39 = sadd.s32 %s38, %s26
      %s40 = smul.u32 %s37, 2
      %s41 = sadd.s32 %s40, %s33
      %s42 = ssub.s32 %s39, %s41
      %p43 = scmp.eq.s32.totalorder %s42, 0
      %s45 = sadd.s32 %s44, 1
      %s46 = scalar_select %p43, %s44, %s45
      %p49 = pneg %p43
      %p50 = scmp.eq.s32.totalorder %s18, 1
      %p51 = por %p49, %p50
      %p52 = scmp.ne.s32.totalorder %s44, %s47
      %p53 = scmp.eq.s32.totalorder %s18, 0
      %p54 = por %p52, %p53
      %p55 = scmp.ne.s32.totalorder %s44, %s47
      %p56 = scmp.eq.s32.totalorder %s23, 1
      %p57 = por %p55, %p56
      %p58 = scmp.ne.s32.totalorder %s47, %s48
      %p59 = scmp.eq.s32.totalorder %s23, 0
      %p60 = por %p58, %p59
      %p61 = scmp.ne.s32.totalorder %s47, %s48
      %p62 = scmp.eq.s32.totalorder %s24, 1
      %p63 = por %p61, %p62
      %p65 = scmp.ne.s32.totalorder %s48, %s64
      %p66 = scmp.eq.s32.totalorder %s24, 0
      %p67 = por %p65, %p66
      %s68 = smul.u32 %s25, 2
      %s69 = sadd.s32 %s68, %s26
      %s70 = smul.u32 %s37, 2
      %s71 = sadd.s32 %s70, %s33
      %s72 = ssub.s32 %s69, %s71
      %p73 = scmp.eq.s32.totalorder %s72, 0
      %s75 = sadd.s32 %s74, 1
      %s76 = scalar_select %p73, %s74, %s75
      %p79 = pneg %p73
      %p80 = scmp.eq.s32.totalorder %s18, 1
      %p81 = por %p79, %p80
      %p82 = scmp.ne.s32.totalorder %s74, %s77
      %p83 = scmp.eq.s32.totalorder %s18, 0
      %p84 = por %p82, %p83
      %p85 = scmp.ne.s32.totalorder %s74, %s77
      %p86 = scmp.eq.s32.totalorder %s23, 1
      %p87 = por %p85, %p86
      %p88 = scmp.ne.s32.totalorder %s77, %s78
      %p89 = scmp.eq.s32.totalorder %s23, 0
      %p90 = por %p88, %p89
      %p91 = scmp.ne.s32.totalorder %s77, %s78
      %p92 = scmp.eq.s32.totalorder %s24, 1
      %p93 = por %p91, %p92
      %p95 = scmp.ne.s32.totalorder %s78, %s94
      %p96 = scmp.eq.s32.totalorder %s24, 0
      %p97 = por %p95, %p96
      %s98 = ssub.s32 %s25, %s37
      %p99 = scmp.eq.s32.totalorder %s98, 0
      %s101 = sadd.s32 %s100, 1
      %s102 = scalar_select %p99, %s100, %s101
      %p105 = pneg %p99
      %p106 = scmp.eq.s32.totalorder %s18, 1
      %p107 = por %p105, %p106
      %p108 = scmp.ne.s32.totalorder %s100, %s103
      %p109 = scmp.eq.s32.totalorder %s18, 0
      %p110 = por %p108, %p109
      %p111 = scmp.ne.s32.totalorder %s100, %s103
      %p112 = scmp.eq.s32.totalorder %s23, 1
      %p113 = por %p111, %p112
      %p114 = scmp.ne.s32.totalorder %s103, %s104
      %p115 = scmp.eq.s32.totalorder %s23, 0
      %p116 = por %p114, %p115
      %p117 = scmp.ne.s32.totalorder %s103, %s104
      %p118 = scmp.eq.s32.totalorder %s24, 1
      %p119 = por %p117, %p118
      %p121 = scmp.ne.s32.totalorder %s104, %s120
      %p122 = scmp.eq.s32.totalorder %s24, 0
      %p123 = por %p121, %p122
      %s124 = ssub.s32 %s25, %s37
      %p125 = scmp.eq.s32.totalorder %s124, 0
      %s127 = sadd.s32 %s126, 1
      %s128 = scalar_select %p125, %s126, %s127
      %p131 = pneg %p125
      %p132 = scmp.eq.s32.totalorder %s18, 1
      %p133 = por %p131, %p132
      %p134 = scmp.ne.s32.totalorder %s126, %s129
      %p135 = scmp.eq.s32.totalorder %s18, 0
      %p136 = por %p134, %p135
      %p137 = scmp.ne.s32.totalorder %s126, %s129
      %p138 = scmp.eq.s32.totalorder %s23, 1
      %p139 = por %p137, %p138
      %p140 = scmp.ne.s32.totalorder %s129, %s130
      %p141 = scmp.eq.s32.totalorder %s23, 0
      %p142 = por %p140, %p141
      %p143 = scmp.ne.s32.totalorder %s129, %s130
      %p144 = scmp.eq.s32.totalorder %s24, 1
      %p145 = por %p143, %p144
      %p147 = scmp.ne.s32.totalorder %s130, %s146
      %p148 = scmp.eq.s32.totalorder %s24, 0
      %p149 = por %p147, %p148
      %p150 = scmp.le.s32.totalorder 1, %s18
      %p151 = scmp.lt.s32.totalorder %s18, 3
      %p152 = pnand %p150, %p151
      %p153 = pneg %p152
      // Predicated region
      $region9: #{tpu_custom_call.1} parent=5 // pred_check
        _
      $region10: #{tpu_custom_call.1} parent=5 // pred_check_branch
        %155 = sbr.rel (%p152) target = $region12
      $region11: #{tpu_custom_call.1} parent=5 // pred_region
        %s156 = ssub.s32 %s18, 1
      $region12: #{tpu_custom_call.1} parent=5 // pred_fallthru
        _
      %p157 = scmp.lt.s32.totalorder %s18, 2
      // Predicated region
      $region13: #{tpu_custom_call.1} parent=5 // pred_check
        %p158 = pneg %p157
      $region14: #{tpu_custom_call.1} parent=5 // pred_check_branch
        %160 = sbr.rel (%p158) target = $region16
      $region15: #{tpu_custom_call.1} parent=5 // pred_region
        // Predicated region
        $region17: #{tpu_custom_call.1} parent=15 // pred_check
          %p161 = pneg %p54
        $region18: #{tpu_custom_call.1} parent=15 // pred_check_branch
          %163 = sbr.rel (%p161) target = $region20
        $region19: #{tpu_custom_call.1} parent=15 // pred_region
          %s164 = sand.u32 %s44, 1
          %s165 = scalar_lea.sflag [#allocation3], %s164
          %s166 = sand.u32 %s44, 1
          %s167 = smul.addr %s166, 2048
          %s168 = scalar_lea.vmem [#allocation2], %s167
          %s169 = smul.u32 %s25, 2
          %s170 = sadd.s32 %s169, %s26
          %s171 = smul.u32 256, %s170
          %s173 = ssub.s32 32768, 32768
          %174 = vsyncadd %s165, %s173
          %s175 = smul.addr %s171, 128
          %s176 = scalar_lea.hbm %s0, %s175
          %s177 = sshll.u32 %s168, 4
          %s178 = int_to_ptr.vmem [resolvable:$true] %s177
          %183 = dma.hbm_to_vmem [thread:$0]  %s176, 32768, %s178, %s165, 128, 128, 8
        $region20: #{tpu_custom_call.1} parent=15 // pred_fallthru
          _
        // Predicated region
        $region21: #{tpu_custom_call.1} parent=15 // pred_check
          %p184 = pneg %p84
        $region22: #{tpu_custom_call.1} parent=15 // pred_check_branch
          %186 = sbr.rel (%p184) target = $region24
        $region23: #{tpu_custom_call.1} parent=15 // pred_region
          %s187 = sand.u32 %s74, 1
          %s188 = scalar_lea.sflag [#allocation6], %s187
          %s189 = sand.u32 %s74, 1
          %s190 = smul.addr %s189, 2048
          %s191 = scalar_lea.vmem [#allocation5], %s190
          %s192 = smul.u32 %s25, 2
          %s193 = sadd.s32 %s192, %s26
          %s194 = smul.u32 256, %s193
          %s196 = ssub.s32 32768, 32768
          %197 = vsyncadd %s188, %s196
          %s198 = smul.addr %s194, 128
          %s199 = scalar_lea.hbm %s1, %s198
          %s200 = sshll.u32 %s191, 4
          %s201 = int_to_ptr.vmem [resolvable:$true] %s200
          %206 = dma.hbm_to_vmem [thread:$0]  %s199, 32768, %s201, %s188, 128, 128, 8
        $region24: #{tpu_custom_call.1} parent=15 // pred_fallthru
          _
      $region16: #{tpu_custom_call.1} parent=5 // pred_fallthru
        _
      %p207 = scmp.le.s32.totalorder 1, %s18
      %p208 = scmp.lt.s32.totalorder %s18, 3
      %p209 = pnand %p207, %p208
      %p210 = pneg %p209
      // Predicated region
      $region25: #{tpu_custom_call.1} parent=5 // pred_check
        _
      $region26: #{tpu_custom_call.1} parent=5 // pred_check_branch
        %212 = sbr.rel (%p209) target = $region28
      $region27: #{tpu_custom_call.1} parent=5 // pred_region
        %s213 = ssub.s32 %s18, 1
        %s214 = sand.u32 %s47, 1
        %s215 = scalar_lea.sflag [#allocation3], %s214
        %s216 = sand.u32 %s47, 1
        %s217 = smul.addr %s216, 2048
        %s218 = scalar_lea.vmem [#allocation2], %s217
        // Predicated region
        $region29: #{tpu_custom_call.1} parent=27 // pred_check
          %p219 = pneg %p60
        $region30: #{tpu_custom_call.1} parent=27 // pred_check_branch
          %221 = sbr.rel (%p219) target = $region32
        $region31: #{tpu_custom_call.1} parent=27 // pred_region
          %222 = dma.done %s215, 32768
        $region32: #{tpu_custom_call.1} parent=27 // pred_fallthru
          _
        %s223 = sand.u32 %s77, 1
        %s224 = scalar_lea.sflag [#allocation6], %s223
        %s225 = sand.u32 %s77, 1
        %s226 = smul.addr %s225, 2048
        %s227 = scalar_lea.vmem [#allocation5], %s226
        // Predicated region
        $region33: #{tpu_custom_call.1} parent=27 // pred_check
          %p228 = pneg %p90
        $region34: #{tpu_custom_call.1} parent=27 // pred_check_branch
          %230 = sbr.rel (%p228) target = $region36
        $region35: #{tpu_custom_call.1} parent=27 // pred_region
          %231 = dma.done %s224, 32768
        $region36: #{tpu_custom_call.1} parent=27 // pred_fallthru
          _
        %s232 = sand.u32 %s47, 1
        %s233 = scalar_lea.sflag [#allocation3], %s232
        %s234 = sand.u32 %s47, 1
        %s235 = smul.addr %s234, 2048
        %s236 = scalar_lea.vmem [#allocation2], %s235
        %p237 = pneg %p60
        %p238 = pneg %p57
        %s239 = sand.u32 %s77, 1
        %s240 = scalar_lea.sflag [#allocation6], %s239
        %s241 = sand.u32 %s77, 1
        %s242 = smul.addr %s241, 2048
        %s243 = scalar_lea.vmem [#allocation5], %s242
        %p244 = pneg %p90
        %p245 = pneg %p87
        %p246 = pneg %p116
        %p247 = pneg %p113
        %p248 = pneg %p142
        %p249 = pneg %p139
        %s250 = smul.u32 %s27, 2
        %s251 = sadd.s32 %s250, %s28
        %s252 = smul.u32 256, %s251
        %s253 = smul.u32 %s27, 2
        %s254 = sadd.s32 %s253, %s28
        %s255 = smul.u32 256, %s254
        %p256 = scmp.eq.s32.totalorder %s28, 0
        // Predicated region
        $region37: #{tpu_custom_call.1} parent=27 // pred_check
          %p257 = pneg %p256
        $region38: #{tpu_custom_call.1} parent=27 // pred_check_branch
          %259 = sbr.rel (%p257) target = $region40
        $region39: #{tpu_custom_call.1} parent=27 // pred_region
          %260 = vst [vmem:[#allocation7] sm:$0xff] 0.0
          %261 = vst [vmem:[#allocation8] sm:$0xff] 0.0
        $region40: #{tpu_custom_call.1} parent=27 // pred_fallthru
          _
        %v262 = vld [vmem:[%s218] sm:$0xff]
        %v263 = vld [vmem:[%s218 + $0x8] sm:$0xff]
        %v264 = vld [vmem:[%s218 + $0x10] sm:$0xff]
        %v265 = vld [vmem:[%s218 + $0x18] sm:$0xff]
        %v266 = vld [vmem:[%s218 + $0x20] sm:$0xff]
        %v267 = vld [vmem:[%s218 + $0x28] sm:$0xff]
        %v268 = vld [vmem:[%s218 + $0x30] sm:$0xff]
        %v269 = vld [vmem:[%s218 + $0x38] sm:$0xff]
        %v270 = vld [vmem:[%s218 + $0x40] sm:$0xff]
        %v271 = vld [vmem:[%s218 + $0x48] sm:$0xff]
        %v272 = vld [vmem:[%s218 + $0x50] sm:$0xff]
        %v273 = vld [vmem:[%s218 + $0x58] sm:$0xff]
        %v274 = vld [vmem:[%s218 + $0x60] sm:$0xff]
        %v275 = vld [vmem:[%s218 + $0x68] sm:$0xff]
        %v276 = vld [vmem:[%s218 + $0x70] sm:$0xff]
        %v277 = vld [vmem:[%s218 + $0x78] sm:$0xff]
        %v278 = vld [vmem:[%s218 + $0x80] sm:$0xff]
        %v279 = vld [vmem:[%s218 + $0x88] sm:$0xff]
        %v280 = vld [vmem:[%s218 + $0x90] sm:$0xff]
        %v281 = vld [vmem:[%s218 + $0x98] sm:$0xff]
        %v282 = vld [vmem:[%s218 + $0xa0] sm:$0xff]
        %v283 = vld [vmem:[%s218 + $0xa8] sm:$0xff]
        %v284 = vld [vmem:[%s218 + $0xb0] sm:$0xff]
        %v285 = vld [vmem:[%s218 + $0xb8] sm:$0xff]
        %v286 = vld [vmem:[%s218 + $0xc0] sm:$0xff]
        %v287 = vld [vmem:[%s218 + $0xc8] sm:$0xff]
        %v288 = vld [vmem:[%s218 + $0xd0] sm:$0xff]
        %v289 = vld [vmem:[%s218 + $0xd8] sm:$0xff]
        %v290 = vld [vmem:[%s218 + $0xe0] sm:$0xff]
        %v291 = vld [vmem:[%s218 + $0xe8] sm:$0xff]
        %v292 = vld [vmem:[%s218 + $0xf0] sm:$0xff]
        %v293 = vld [vmem:[%s218 + $0xf8] sm:$0xff]
        %v294 = vld [vmem:[%s227] sm:$0xff]
        %v295 = vld [vmem:[%s227 + $0x8] sm:$0xff]
        %v296 = vld [vmem:[%s227 + $0x10] sm:$0xff]
        %v297 = vld [vmem:[%s227 + $0x18] sm:$0xff]
        %v298 = vld [vmem:[%s227 + $0x20] sm:$0xff]
        %v299 = vld [vmem:[%s227 + $0x28] sm:$0xff]
        %v300 = vld [vmem:[%s227 + $0x30] sm:$0xff]
        %v301 = vld [vmem:[%s227 + $0x38] sm:$0xff]
        %v302 = vld [vmem:[%s227 + $0x40] sm:$0xff]
        %v303 = vld [vmem:[%s227 + $0x48] sm:$0xff]
        %v304 = vld [vmem:[%s227 + $0x50] sm:$0xff]
        %v305 = vld [vmem:[%s227 + $0x58] sm:$0xff]
        %v306 = vld [vmem:[%s227 + $0x60] sm:$0xff]
        %v307 = vld [vmem:[%s227 + $0x68] sm:$0xff]
        %v308 = vld [vmem:[%s227 + $0x70] sm:$0xff]
        %v309 = vld [vmem:[%s227 + $0x78] sm:$0xff]
        %v310 = vld [vmem:[%s227 + $0x80] sm:$0xff]
        %v311 = vld [vmem:[%s227 + $0x88] sm:$0xff]
        %v312 = vld [vmem:[%s227 + $0x90] sm:$0xff]
        %v313 = vld [vmem:[%s227 + $0x98] sm:$0xff]
        %v314 = vld [vmem:[%s227 + $0xa0] sm:$0xff]
        %v315 = vld [vmem:[%s227 + $0xa8] sm:$0xff]
        %v316 = vld [vmem:[%s227 + $0xb0] sm:$0xff]
        %v317 = vld [vmem:[%s227 + $0xb8] sm:$0xff]
        %v318 = vld [vmem:[%s227 + $0xc0] sm:$0xff]
        %v319 = vld [vmem:[%s227 + $0xc8] sm:$0xff]
        %v320 = vld [vmem:[%s227 + $0xd0] sm:$0xff]
        %v321 = vld [vmem:[%s227 + $0xd8] sm:$0xff]
        %v322 = vld [vmem:[%s227 + $0xe0] sm:$0xff]
        %v323 = vld [vmem:[%s227 + $0xe8] sm:$0xff]
        %v324 = vld [vmem:[%s227 + $0xf0] sm:$0xff]
        %v325 = vld [vmem:[%s227 + $0xf8] sm:$0xff]
        %v326 = vmul.f32 %v262, %v294
        %v327 = vmul.f32 %v263, %v295
        %v328 = vmul.f32 %v264, %v296
        %v329 = vmul.f32 %v265, %v297
        %v330 = vmul.f32 %v266, %v298
        %v331 = vmul.f32 %v267, %v299
        %v332 = vmul.f32 %v268, %v300
        %v333 = vmul.f32 %v269, %v301
        %v334 = vmul.f32 %v270, %v302
        %v335 = vmul.f32 %v271, %v303
        %v336 = vmul.f32 %v272, %v304
        %v337 = vmul.f32 %v273, %v305
        %v338 = vmul.f32 %v274, %v306
        %v339 = vmul.f32 %v275, %v307
        %v340 = vmul.f32 %v276, %v308
        %v341 = vmul.f32 %v277, %v309
        %v342 = vmul.f32 %v278, %v310
        %v343 = vmul.f32 %v279, %v311
        %v344 = vmul.f32 %v280, %v312
        %v345 = vmul.f32 %v281, %v313
        %v346 = vmul.f32 %v282, %v314
        %v347 = vmul.f32 %v283, %v315
        %v348 = vmul.f32 %v284, %v316
        %v349 = vmul.f32 %v285, %v317
        %v350 = vmul.f32 %v286, %v318
        %v351 = vmul.f32 %v287, %v319
        %v352 = vmul.f32 %v288, %v320
        %v353 = vmul.f32 %v289, %v321
        %v354 = vmul.f32 %v290, %v322
        %v355 = vmul.f32 %v291, %v323
        %v356 = vmul.f32 %v292, %v324
        %v357 = vmul.f32 %v293, %v325
        %v358 = vadd.f32 %v326, %v327
        %v359 = vadd.f32 %v358, %v328
        %v360 = vadd.f32 %v359, %v329
        %v361 = vadd.f32 %v360, %v330
        %v362 = vadd.f32 %v361, %v331
        %v363 = vadd.f32 %v362, %v332
        %v364 = vadd.f32 %v363, %v333
        %v365 = vadd.f32 %v364, %v334
        %v366 = vadd.f32 %v365, %v335
        %v367 = vadd.f32 %v366, %v336
        %v368 = vadd.f32 %v367, %v337
        %v369 = vadd.f32 %v368, %v338
        %v370 = vadd.f32 %v369, %v339
        %v371 = vadd.f32 %v370, %v340
        %v372 = vadd.f32 %v371, %v341
        %v373 = vadd.f32 %v372, %v342
        %v374 = vadd.f32 %v373, %v343
        %v375 = vadd.f32 %v374, %v344
        %v376 = vadd.f32 %v375, %v345
        %v377 = vadd.f32 %v376, %v346
        %v378 = vadd.f32 %v377, %v347
        %v379 = vadd.f32 %v378, %v348
        %v380 = vadd.f32 %v379, %v349
        %v381 = vadd.f32 %v380, %v350
        %v382 = vadd.f32 %v381, %v351
        %v383 = vadd.f32 %v382, %v352
        %v384 = vadd.f32 %v383, %v353
        %v385 = vadd.f32 %v384, %v354
        %v386 = vadd.f32 %v385, %v355
        %v387 = vadd.f32 %v386, %v356
        %v388 = vadd.f32 %v387, %v357
        %v389 = vadd.f32 %v388, 0.0
        %v390 = vadd.f32 %v262, %v294
        %v391 = vadd.f32 %v263, %v295
        %v392 = vadd.f32 %v264, %v296
        %v393 = vadd.f32 %v265, %v297
        %v394 = vadd.f32 %v266, %v298
        %v395 = vadd.f32 %v267, %v299
        %v396 = vadd.f32 %v268, %v300
        %v397 = vadd.f32 %v269, %v301
        %v398 = vadd.f32 %v270, %v302
        %v399 = vadd.f32 %v271, %v303
        %v400 = vadd.f32 %v272, %v304
        %v401 = vadd.f32 %v273, %v305
        %v402 = vadd.f32 %v274, %v306
        %v403 = vadd.f32 %v275, %v307
        %v404 = vadd.f32 %v276, %v308
        %v405 = vadd.f32 %v277, %v309
        %v406 = vadd.f32 %v278, %v310
        %v407 = vadd.f32 %v279, %v311
        %v408 = vadd.f32 %v280, %v312
        %v409 = vadd.f32 %v281, %v313
        %v410 = vadd.f32 %v282, %v314
        %v411 = vadd.f32 %v283, %v315
        %v412 = vadd.f32 %v284, %v316
        %v413 = vadd.f32 %v285, %v317
        %v414 = vadd.f32 %v286, %v318
        %v415 = vadd.f32 %v287, %v319
        %v416 = vadd.f32 %v288, %v320
        %v417 = vadd.f32 %v289, %v321
        %v418 = vadd.f32 %v290, %v322
        %v419 = vadd.f32 %v291, %v323
        %v420 = vadd.f32 %v292, %v324
        %v421 = vadd.f32 %v293, %v325
        %v422 = vadd.f32 %v390, %v391
        %v423 = vadd.f32 %v422, %v392
        %v424 = vadd.f32 %v423, %v393
        %v425 = vadd.f32 %v424, %v394
        %v426 = vadd.f32 %v425, %v395
        %v427 = vadd.f32 %v426, %v396
        %v428 = vadd.f32 %v427, %v397
        %v429 = vadd.f32 %v428, %v398
        %v430 = vadd.f32 %v429, %v399
        %v431 = vadd.f32 %v430, %v400
        %v432 = vadd.f32 %v431, %v401
        %v433 = vadd.f32 %v432, %v402
        %v434 = vadd.f32 %v433, %v403
        %v435 = vadd.f32 %v434, %v404
        %v436 = vadd.f32 %v435, %v405
        %v437 = vadd.f32 %v436, %v406
        %v438 = vadd.f32 %v437, %v407
        %v439 = vadd.f32 %v438, %v408
        %v440 = vadd.f32 %v439, %v409
        %v441 = vadd.f32 %v440, %v410
        %v442 = vadd.f32 %v441, %v411
        %v443 = vadd.f32 %v442, %v412
        %v444 = vadd.f32 %v443, %v413
        %v445 = vadd.f32 %v444, %v414
        %v446 = vadd.f32 %v445, %v415
        %v447 = vadd.f32 %v446, %v416
        %v448 = vadd.f32 %v447, %v417
        %v449 = vadd.f32 %v448, %v418
        %v450 = vadd.f32 %v449, %v419
        %v451 = vadd.f32 %v450, %v420
        %v452 = vadd.f32 %v451, %v421
        %v453 = vadd.f32 %v452, 0.0
        %s454 = scalar_lea.vmem %s218, 256 [#allocation2]
        %v455 = vld [vmem:[%s454] sm:$0xff]
        %v456 = vld [vmem:[%s454 + $0x8] sm:$0xff]
        %v457 = vld [vmem:[%s454 + $0x10] sm:$0xff]
        %v458 = vld [vmem:[%s454 + $0x18] sm:$0xff]
        %v459 = vld [vmem:[%s454 + $0x20] sm:$0xff]
        %v460 = vld [vmem:[%s454 + $0x28] sm:$0xff]
        %v461 = vld [vmem:[%s454 + $0x30] sm:$0xff]
        %v462 = vld [vmem:[%s454 + $0x38] sm:$0xff]
        %v463 = vld [vmem:[%s454 + $0x40] sm:$0xff]
        %v464 = vld [vmem:[%s454 + $0x48] sm:$0xff]
        %v465 = vld [vmem:[%s454 + $0x50] sm:$0xff]
        %v466 = vld [vmem:[%s454 + $0x58] sm:$0xff]
        %v467 = vld [vmem:[%s454 + $0x60] sm:$0xff]
        %v468 = vld [vmem:[%s454 + $0x68] sm:$0xff]
        %v469 = vld [vmem:[%s454 + $0x70] sm:$0xff]
        %v470 = vld [vmem:[%s454 + $0x78] sm:$0xff]
        %v471 = vld [vmem:[%s454 + $0x80] sm:$0xff]
        %v472 = vld [vmem:[%s454 + $0x88] sm:$0xff]
        %v473 = vld [vmem:[%s454 + $0x90] sm:$0xff]
        %v474 = vld [vmem:[%s454 + $0x98] sm:$0xff]
        %v475 = vld [vmem:[%s454 + $0xa0] sm:$0xff]
        %v476 = vld [vmem:[%s454 + $0xa8] sm:$0xff]
        %v477 = vld [vmem:[%s454 + $0xb0] sm:$0xff]
        %v478 = vld [vmem:[%s454 + $0xb8] sm:$0xff]
        %v479 = vld [vmem:[%s454 + $0xc0] sm:$0xff]
        %v480 = vld [vmem:[%s454 + $0xc8] sm:$0xff]
        %v481 = vld [vmem:[%s454 + $0xd0] sm:$0xff]
        %v482 = vld [vmem:[%s454 + $0xd8] sm:$0xff]
        %v483 = vld [vmem:[%s454 + $0xe0] sm:$0xff]
        %v484 = vld [vmem:[%s454 + $0xe8] sm:$0xff]
        %v485 = vld [vmem:[%s454 + $0xf0] sm:$0xff]
        %v486 = vld [vmem:[%s454 + $0xf8] sm:$0xff]
        %s487 = scalar_lea.vmem %s227, 256 [#allocation5]
        %v488 = vld [vmem:[%s487] sm:$0xff]
        %v489 = vld [vmem:[%s487 + $0x8] sm:$0xff]
        %v490 = vld [vmem:[%s487 + $0x10] sm:$0xff]
        %v491 = vld [vmem:[%s487 + $0x18] sm:$0xff]
        %v492 = vld [vmem:[%s487 + $0x20] sm:$0xff]
        %v493 = vld [vmem:[%s487 + $0x28] sm:$0xff]
        %v494 = vld [vmem:[%s487 + $0x30] sm:$0xff]
        %v495 = vld [vmem:[%s487 + $0x38] sm:$0xff]
        %v496 = vld [vmem:[%s487 + $0x40] sm:$0xff]
        %v497 = vld [vmem:[%s487 + $0x48] sm:$0xff]
        %v498 = vld [vmem:[%s487 + $0x50] sm:$0xff]
        %v499 = vld [vmem:[%s487 + $0x58] sm:$0xff]
        %v500 = vld [vmem:[%s487 + $0x60] sm:$0xff]
        %v501 = vld [vmem:[%s487 + $0x68] sm:$0xff]
        %v502 = vld [vmem:[%s487 + $0x70] sm:$0xff]
        %v503 = vld [vmem:[%s487 + $0x78] sm:$0xff]
        %v504 = vld [vmem:[%s487 + $0x80] sm:$0xff]
        %v505 = vld [vmem:[%s487 + $0x88] sm:$0xff]
        %v506 = vld [vmem:[%s487 + $0x90] sm:$0xff]
        %v507 = vld [vmem:[%s487 + $0x98] sm:$0xff]
        %v508 = vld [vmem:[%s487 + $0xa0] sm:$0xff]
        %v509 = vld [vmem:[%s487 + $0xa8] sm:$0xff]
        %v510 = vld [vmem:[%s487 + $0xb0] sm:$0xff]
        %v511 = vld [vmem:[%s487 + $0xb8] sm:$0xff]
        %v512 = vld [vmem:[%s487 + $0xc0] sm:$0xff]
        %v513 = vld [vmem:[%s487 + $0xc8] sm:$0xff]
        %v514 = vld [vmem:[%s487 + $0xd0] sm:$0xff]
        %v515 = vld [vmem:[%s487 + $0xd8] sm:$0xff]
        %v516 = vld [vmem:[%s487 + $0xe0] sm:$0xff]
        %v517 = vld [vmem:[%s487 + $0xe8] sm:$0xff]
        %v518 = vld [vmem:[%s487 + $0xf0] sm:$0xff]
        %v519 = vld [vmem:[%s487 + $0xf8] sm:$0xff]
        %v520 = vmul.f32 %v455, %v488
        %v521 = vmul.f32 %v456, %v489
        %v522 = vmul.f32 %v457, %v490
        %v523 = vmul.f32 %v458, %v491
        %v524 = vmul.f32 %v459, %v492
        %v525 = vmul.f32 %v460, %v493
        %v526 = vmul.f32 %v461, %v494
        %v527 = vmul.f32 %v462, %v495
        %v528 = vmul.f32 %v463, %v496
        %v529 = vmul.f32 %v464, %v497
        %v530 = vmul.f32 %v465, %v498
        %v531 = vmul.f32 %v466, %v499
        %v532 = vmul.f32 %v467, %v500
        %v533 = vmul.f32 %v468, %v501
        %v534 = vmul.f32 %v469, %v502
        %v535 = vmul.f32 %v470, %v503
        %v536 = vmul.f32 %v471, %v504
        %v537 = vmul.f32 %v472, %v505
        %v538 = vmul.f32 %v473, %v506
        %v539 = vmul.f32 %v474, %v507
        %v540 = vmul.f32 %v475, %v508
        %v541 = vmul.f32 %v476, %v509
        %v542 = vmul.f32 %v477, %v510
        %v543 = vmul.f32 %v478, %v511
        %v544 = vmul.f32 %v479, %v512
        %v545 = vmul.f32 %v480, %v513
        %v546 = vmul.f32 %v481, %v514
        %v547 = vmul.f32 %v482, %v515
        %v548 = vmul.f32 %v483, %v516
        %v549 = vmul.f32 %v484, %v517
        %v550 = vmul.f32 %v485, %v518
        %v551 = vmul.f32 %v486, %v519
        %v552 = vadd.f32 %v520, %v521
        %v553 = vadd.f32 %v552, %v522
        %v554 = vadd.f32 %v553, %v523
        %v555 = vadd.f32 %v554, %v524
        %v556 = vadd.f32 %v555, %v525
        %v557 = vadd.f32 %v556, %v526
        %v558 = vadd.f32 %v557, %v527
        %v559 = vadd.f32 %v558, %v528
        %v560 = vadd.f32 %v559, %v529
        %v561 = vadd.f32 %v560, %v530
        %v562 = vadd.f32 %v561, %v531
        %v563 = vadd.f32 %v562, %v532
        %v564 = vadd.f32 %v563, %v533
        %v565 = vadd.f32 %v564, %v534
        %v566 = vadd.f32 %v565, %v535
        %v567 = vadd.f32 %v566, %v536
        %v568 = vadd.f32 %v567, %v537
        %v569 = vadd.f32 %v568, %v538
        %v570 = vadd.f32 %v569, %v539
        %v571 = vadd.f32 %v570, %v540
        %v572 = vadd.f32 %v571, %v541
        %v573 = vadd.f32 %v572, %v542
        %v574 = vadd.f32 %v573, %v543
        %v575 = vadd.f32 %v574, %v544
        %v576 = vadd.f32 %v575, %v545
        %v577 = vadd.f32 %v576, %v546
        %v578 = vadd.f32 %v577, %v547
        %v579 = vadd.f32 %v578, %v548
        %v580 = vadd.f32 %v579, %v549
        %v581 = vadd.f32 %v580, %v550
        %v582 = vadd.f32 %v581, %v551
        %v583 = vadd.f32 %v389, %v582
        %v584 = vadd.f32 %v455, %v488
        %v585 = vadd.f32 %v456, %v489
        %v586 = vadd.f32 %v457, %v490
        %v587 = vadd.f32 %v458, %v491
        %v588 = vadd.f32 %v459, %v492
        %v589 = vadd.f32 %v460, %v493
        %v590 = vadd.f32 %v461, %v494
        %v591 = vadd.f32 %v462, %v495
        %v592 = vadd.f32 %v463, %v496
        %v593 = vadd.f32 %v464, %v497
        %v594 = vadd.f32 %v465, %v498
        %v595 = vadd.f32 %v466, %v499
        %v596 = vadd.f32 %v467, %v500
        %v597 = vadd.f32 %v468, %v501
        %v598 = vadd.f32 %v469, %v502
        %v599 = vadd.f32 %v470, %v503
        %v600 = vadd.f32 %v471, %v504
        %v601 = vadd.f32 %v472, %v505
        %v602 = vadd.f32 %v473, %v506
        %v603 = vadd.f32 %v474, %v507
        %v604 = vadd.f32 %v475, %v508
        %v605 = vadd.f32 %v476, %v509
        %v606 = vadd.f32 %v477, %v510
        %v607 = vadd.f32 %v478, %v511
        %v608 = vadd.f32 %v479, %v512
        %v609 = vadd.f32 %v480, %v513
        %v610 = vadd.f32 %v481, %v514
        %v611 = vadd.f32 %v482, %v515
        %v612 = vadd.f32 %v483, %v516
        %v613 = vadd.f32 %v484, %v517
        %v614 = vadd.f32 %v485, %v518
        %v615 = vadd.f32 %v486, %v519
        %v616 = vadd.f32 %v584, %v585
        %v617 = vadd.f32 %v616, %v586
        %v618 = vadd.f32 %v617, %v587
        %v619 = vadd.f32 %v618, %v588
        %v620 = vadd.f32 %v619, %v589
        %v621 = vadd.f32 %v620, %v590
        %v622 = vadd.f32 %v621, %v591
        %v623 = vadd.f32 %v622, %v592
        %v624 = vadd.f32 %v623, %v593
        %v625 = vadd.f32 %v624, %v594
        %v626 = vadd.f32 %v625, %v595
        %v627 = vadd.f32 %v626, %v596
        %v628 = vadd.f32 %v627, %v597
        %v629 = vadd.f32 %v628, %v598
        %v630 = vadd.f32 %v629, %v599
        %v631 = vadd.f32 %v630, %v600
        %v632 = vadd.f32 %v631, %v601
        %v633 = vadd.f32 %v632, %v602
        %v634 = vadd.f32 %v633, %v603
        %v635 = vadd.f32 %v634, %v604
        %v636 = vadd.f32 %v635, %v605
        %v637 = vadd.f32 %v636, %v606
        %v638 = vadd.f32 %v637, %v607
        %v639 = vadd.f32 %v638, %v608
        %v640 = vadd.f32 %v639, %v609
        %v641 = vadd.f32 %v640, %v610
        %v642 = vadd.f32 %v641, %v611
        %v643 = vadd.f32 %v642, %v612
        %v644 = vadd.f32 %v643, %v613
        %v645 = vadd.f32 %v644, %v614
        %v646 = vadd.f32 %v645, %v615
        %v647 = vadd.f32 %v453, %v646
        %s648 = scalar_lea.vmem %s218, 512 [#allocation2]
        %v649 = vld [vmem:[%s648] sm:$0xff]
        %v650 = vld [vmem:[%s648 + $0x8] sm:$0xff]
        %v651 = vld [vmem:[%s648 + $0x10] sm:$0xff]
        %v652 = vld [vmem:[%s648 + $0x18] sm:$0xff]
        %v653 = vld [vmem:[%s648 + $0x20] sm:$0xff]
        %v654 = vld [vmem:[%s648 + $0x28] sm:$0xff]
        %v655 = vld [vmem:[%s648 + $0x30] sm:$0xff]
        %v656 = vld [vmem:[%s648 + $0x38] sm:$0xff]
        %v657 = vld [vmem:[%s648 + $0x40] sm:$0xff]
        %v658 = vld [vmem:[%s648 + $0x48] sm:$0xff]
        %v659 = vld [vmem:[%s648 + $0x50] sm:$0xff]
        %v660 = vld [vmem:[%s648 + $0x58] sm:$0xff]
        %v661 = vld [vmem:[%s648 + $0x60] sm:$0xff]
        %v662 = vld [vmem:[%s648 + $0x68] sm:$0xff]
        %v663 = vld [vmem:[%s648 + $0x70] sm:$0xff]
        %v664 = vld [vmem:[%s648 + $0x78] sm:$0xff]
        %v665 = vld [vmem:[%s648 + $0x80] sm:$0xff]
        %v666 = vld [vmem:[%s648 + $0x88] sm:$0xff]
        %v667 = vld [vmem:[%s648 + $0x90] sm:$0xff]
        %v668 = vld [vmem:[%s648 + $0x98] sm:$0xff]
        %v669 = vld [vmem:[%s648 + $0xa0] sm:$0xff]
        %v670 = vld [vmem:[%s648 + $0xa8] sm:$0xff]
        %v671 = vld [vmem:[%s648 + $0xb0] sm:$0xff]
        %v672 = vld [vmem:[%s648 + $0xb8] sm:$0xff]
        %v673 = vld [vmem:[%s648 + $0xc0] sm:$0xff]
        %v674 = vld [vmem:[%s648 + $0xc8] sm:$0xff]
        %v675 = vld [vmem:[%s648 + $0xd0] sm:$0xff]
        %v676 = vld [vmem:[%s648 + $0xd8] sm:$0xff]
        %v677 = vld [vmem:[%s648 + $0xe0] sm:$0xff]
        %v678 = vld [vmem:[%s648 + $0xe8] sm:$0xff]
        %v679 = vld [vmem:[%s648 + $0xf0] sm:$0xff]
        %v680 = vld [vmem:[%s648 + $0xf8] sm:$0xff]
        %s681 = scalar_lea.vmem %s227, 512 [#allocation5]
        %v682 = vld [vmem:[%s681] sm:$0xff]
        %v683 = vld [vmem:[%s681 + $0x8] sm:$0xff]
        %v684 = vld [vmem:[%s681 + $0x10] sm:$0xff]
        %v685 = vld [vmem:[%s681 + $0x18] sm:$0xff]
        %v686 = vld [vmem:[%s681 + $0x20] sm:$0xff]
        %v687 = vld [vmem:[%s681 + $0x28] sm:$0xff]
        %v688 = vld [vmem:[%s681 + $0x30] sm:$0xff]
        %v689 = vld [vmem:[%s681 + $0x38] sm:$0xff]
        %v690 = vld [vmem:[%s681 + $0x40] sm:$0xff]
        %v691 = vld [vmem:[%s681 + $0x48] sm:$0xff]
        %v692 = vld [vmem:[%s681 + $0x50] sm:$0xff]
        %v693 = vld [vmem:[%s681 + $0x58] sm:$0xff]
        %v694 = vld [vmem:[%s681 + $0x60] sm:$0xff]
        %v695 = vld [vmem:[%s681 + $0x68] sm:$0xff]
        %v696 = vld [vmem:[%s681 + $0x70] sm:$0xff]
        %v697 = vld [vmem:[%s681 + $0x78] sm:$0xff]
        %v698 = vld [vmem:[%s681 + $0x80] sm:$0xff]
        %v699 = vld [vmem:[%s681 + $0x88] sm:$0xff]
        %v700 = vld [vmem:[%s681 + $0x90] sm:$0xff]
        %v701 = vld [vmem:[%s681 + $0x98] sm:$0xff]
        %v702 = vld [vmem:[%s681 + $0xa0] sm:$0xff]
        %v703 = vld [vmem:[%s681 + $0xa8] sm:$0xff]
        %v704 = vld [vmem:[%s681 + $0xb0] sm:$0xff]
        %v705 = vld [vmem:[%s681 + $0xb8] sm:$0xff]
        %v706 = vld [vmem:[%s681 + $0xc0] sm:$0xff]
        %v707 = vld [vmem:[%s681 + $0xc8] sm:$0xff]
        %v708 = vld [vmem:[%s681 + $0xd0] sm:$0xff]
        %v709 = vld [vmem:[%s681 + $0xd8] sm:$0xff]
        %v710 = vld [vmem:[%s681 + $0xe0] sm:$0xff]
        %v711 = vld [vmem:[%s681 + $0xe8] sm:$0xff]
        %v712 = vld [vmem:[%s681 + $0xf0] sm:$0xff]
        %v713 = vld [vmem:[%s681 + $0xf8] sm:$0xff]
        %v714 = vmul.f32 %v649, %v682
        %v715 = vmul.f32 %v650, %v683
        %v716 = vmul.f32 %v651, %v684
        %v717 = vmul.f32 %v652, %v685
        %v718 = vmul.f32 %v653, %v686
        %v719 = vmul.f32 %v654, %v687
        %v720 = vmul.f32 %v655, %v688
        %v721 = vmul.f32 %v656, %v689
        %v722 = vmul.f32 %v657, %v690
        %v723 = vmul.f32 %v658, %v691
        %v724 = vmul.f32 %v659, %v692
        %v725 = vmul.f32 %v660, %v693
        %v726 = vmul.f32 %v661, %v694
        %v727 = vmul.f32 %v662, %v695
        %v728 = vmul.f32 %v663, %v696
        %v729 = vmul.f32 %v664, %v697
        %v730 = vmul.f32 %v665, %v698
        %v731 = vmul.f32 %v666, %v699
        %v732 = vmul.f32 %v667, %v700
        %v733 = vmul.f32 %v668, %v701
        %v734 = vmul.f32 %v669, %v702
        %v735 = vmul.f32 %v670, %v703
        %v736 = vmul.f32 %v671, %v704
        %v737 = vmul.f32 %v672, %v705
        %v738 = vmul.f32 %v673, %v706
        %v739 = vmul.f32 %v674, %v707
        %v740 = vmul.f32 %v675, %v708
        %v741 = vmul.f32 %v676, %v709
        %v742 = vmul.f32 %v677, %v710
        %v743 = vmul.f32 %v678, %v711
        %v744 = vmul.f32 %v679, %v712
        %v745 = vmul.f32 %v680, %v713
        %v746 = vadd.f32 %v714, %v715
        %v747 = vadd.f32 %v746, %v716
        %v748 = vadd.f32 %v747, %v717
        %v749 = vadd.f32 %v748, %v718
        %v750 = vadd.f32 %v749, %v719
        %v751 = vadd.f32 %v750, %v720
        %v752 = vadd.f32 %v751, %v721
        %v753 = vadd.f32 %v752, %v722
        %v754 = vadd.f32 %v753, %v723
        %v755 = vadd.f32 %v754, %v724
        %v756 = vadd.f32 %v755, %v725
        %v757 = vadd.f32 %v756, %v726
        %v758 = vadd.f32 %v757, %v727
        %v759 = vadd.f32 %v758, %v728
        %v760 = vadd.f32 %v759, %v729
        %v761 = vadd.f32 %v760, %v730
        %v762 = vadd.f32 %v761, %v731
        %v763 = vadd.f32 %v762, %v732
        %v764 = vadd.f32 %v763, %v733
        %v765 = vadd.f32 %v764, %v734
        %v766 = vadd.f32 %v765, %v735
        %v767 = vadd.f32 %v766, %v736
        %v768 = vadd.f32 %v767, %v737
        %v769 = vadd.f32 %v768, %v738
        %v770 = vadd.f32 %v769, %v739
        %v771 = vadd.f32 %v770, %v740
        %v772 = vadd.f32 %v771, %v741
        %v773 = vadd.f32 %v772, %v742
        %v774 = vadd.f32 %v773, %v743
        %v775 = vadd.f32 %v774, %v744
        %v776 = vadd.f32 %v775, %v745
        %v777 = vadd.f32 %v583, %v776
        %v778 = vadd.f32 %v649, %v682
        %v779 = vadd.f32 %v650, %v683
        %v780 = vadd.f32 %v651, %v684
        %v781 = vadd.f32 %v652, %v685
        %v782 = vadd.f32 %v653, %v686
        %v783 = vadd.f32 %v654, %v687
        %v784 = vadd.f32 %v655, %v688
        %v785 = vadd.f32 %v656, %v689
        %v786 = vadd.f32 %v657, %v690
        %v787 = vadd.f32 %v658, %v691
        %v788 = vadd.f32 %v659, %v692
        %v789 = vadd.f32 %v660, %v693
        %v790 = vadd.f32 %v661, %v694
        %v791 = vadd.f32 %v662, %v695
        %v792 = vadd.f32 %v663, %v696
        %v793 = vadd.f32 %v664, %v697
        %v794 = vadd.f32 %v665, %v698
        %v795 = vadd.f32 %v666, %v699
        %v796 = vadd.f32 %v667, %v700
        %v797 = vadd.f32 %v668, %v701
        %v798 = vadd.f32 %v669, %v702
        %v799 = vadd.f32 %v670, %v703
        %v800 = vadd.f32 %v671, %v704
        %v801 = vadd.f32 %v672, %v705
        %v802 = vadd.f32 %v673, %v706
        %v803 = vadd.f32 %v674, %v707
        %v804 = vadd.f32 %v675, %v708
        %v805 = vadd.f32 %v676, %v709
        %v806 = vadd.f32 %v677, %v710
        %v807 = vadd.f32 %v678, %v711
        %v808 = vadd.f32 %v679, %v712
        %v809 = vadd.f32 %v680, %v713
        %v810 = vadd.f32 %v778, %v779
        %v811 = vadd.f32 %v810, %v780
        %v812 = vadd.f32 %v811, %v781
        %v813 = vadd.f32 %v812, %v782
        %v814 = vadd.f32 %v813, %v783
        %v815 = vadd.f32 %v814, %v784
        %v816 = vadd.f32 %v815, %v785
        %v817 = vadd.f32 %v816, %v786
        %v818 = vadd.f32 %v817, %v787
        %v819 = vadd.f32 %v818, %v788
        %v820 = vadd.f32 %v819, %v789
        %v821 = vadd.f32 %v820, %v790
        %v822 = vadd.f32 %v821, %v791
        %v823 = vadd.f32 %v822, %v792
        %v824 = vadd.f32 %v823, %v793
        %v825 = vadd.f32 %v824, %v794
        %v826 = vadd.f32 %v825, %v795
        %v827 = vadd.f32 %v826, %v796
        %v828 = vadd.f32 %v827, %v797
        %v829 = vadd.f32 %v828, %v798
        %v830 = vadd.f32 %v829, %v799
        %v831 = vadd.f32 %v830, %v800
        %v832 = vadd.f32 %v831, %v801
        %v833 = vadd.f32 %v832, %v802
        %v834 = vadd.f32 %v833, %v803
        %v835 = vadd.f32 %v834, %v804
        %v836 = vadd.f32 %v835, %v805
        %v837 = vadd.f32 %v836, %v806
        %v838 = vadd.f32 %v837, %v807
        %v839 = vadd.f32 %v838, %v808
        %v840 = vadd.f32 %v839, %v809
        %v841 = vadd.f32 %v647, %v840
        %s842 = scalar_lea.vmem %s218, 768 [#allocation2]
        %v843 = vld [vmem:[%s842] sm:$0xff]
        %v844 = vld [vmem:[%s842 + $0x8] sm:$0xff]
        %v845 = vld [vmem:[%s842 + $0x10] sm:$0xff]
        %v846 = vld [vmem:[%s842 + $0x18] sm:$0xff]
        %v847 = vld [vmem:[%s842 + $0x20] sm:$0xff]
        %v848 = vld [vmem:[%s842 + $0x28] sm:$0xff]
        %v849 = vld [vmem:[%s842 + $0x30] sm:$0xff]
        %v850 = vld [vmem:[%s842 + $0x38] sm:$0xff]
        %v851 = vld [vmem:[%s842 + $0x40] sm:$0xff]
        %v852 = vld [vmem:[%s842 + $0x48] sm:$0xff]
        %v853 = vld [vmem:[%s842 + $0x50] sm:$0xff]
        %v854 = vld [vmem:[%s842 + $0x58] sm:$0xff]
        %v855 = vld [vmem:[%s842 + $0x60] sm:$0xff]
        %v856 = vld [vmem:[%s842 + $0x68] sm:$0xff]
        %v857 = vld [vmem:[%s842 + $0x70] sm:$0xff]
        %v858 = vld [vmem:[%s842 + $0x78] sm:$0xff]
        %v859 = vld [vmem:[%s842 + $0x80] sm:$0xff]
        %v860 = vld [vmem:[%s842 + $0x88] sm:$0xff]
        %v861 = vld [vmem:[%s842 + $0x90] sm:$0xff]
        %v862 = vld [vmem:[%s842 + $0x98] sm:$0xff]
        %v863 = vld [vmem:[%s842 + $0xa0] sm:$0xff]
        %v864 = vld [vmem:[%s842 + $0xa8] sm:$0xff]
        %v865 = vld [vmem:[%s842 + $0xb0] sm:$0xff]
        %v866 = vld [vmem:[%s842 + $0xb8] sm:$0xff]
        %v867 = vld [vmem:[%s842 + $0xc0] sm:$0xff]
        %v868 = vld [vmem:[%s842 + $0xc8] sm:$0xff]
        %v869 = vld [vmem:[%s842 + $0xd0] sm:$0xff]
        %v870 = vld [vmem:[%s842 + $0xd8] sm:$0xff]
        %v871 = vld [vmem:[%s842 + $0xe0] sm:$0xff]
        %v872 = vld [vmem:[%s842 + $0xe8] sm:$0xff]
        %v873 = vld [vmem:[%s842 + $0xf0] sm:$0xff]
        %v874 = vld [vmem:[%s842 + $0xf8] sm:$0xff]
        %s875 = scalar_lea.vmem %s227, 768 [#allocation5]
        %v876 = vld [vmem:[%s875] sm:$0xff]
        %v877 = vld [vmem:[%s875 + $0x8] sm:$0xff]
        %v878 = vld [vmem:[%s875 + $0x10] sm:$0xff]
        %v879 = vld [vmem:[%s875 + $0x18] sm:$0xff]
        %v880 = vld [vmem:[%s875 + $0x20] sm:$0xff]
        %v881 = vld [vmem:[%s875 + $0x28] sm:$0xff]
        %v882 = vld [vmem:[%s875 + $0x30] sm:$0xff]
        %v883 = vld [vmem:[%s875 + $0x38] sm:$0xff]
        %v884 = vld [vmem:[%s875 + $0x40] sm:$0xff]
        %v885 = vld [vmem:[%s875 + $0x48] sm:$0xff]
        %v886 = vld [vmem:[%s875 + $0x50] sm:$0xff]
        %v887 = vld [vmem:[%s875 + $0x58] sm:$0xff]
        %v888 = vld [vmem:[%s875 + $0x60] sm:$0xff]
        %v889 = vld [vmem:[%s875 + $0x68] sm:$0xff]
        %v890 = vld [vmem:[%s875 + $0x70] sm:$0xff]
        %v891 = vld [vmem:[%s875 + $0x78] sm:$0xff]
        %v892 = vld [vmem:[%s875 + $0x80] sm:$0xff]
        %v893 = vld [vmem:[%s875 + $0x88] sm:$0xff]
        %v894 = vld [vmem:[%s875 + $0x90] sm:$0xff]
        %v895 = vld [vmem:[%s875 + $0x98] sm:$0xff]
        %v896 = vld [vmem:[%s875 + $0xa0] sm:$0xff]
        %v897 = vld [vmem:[%s875 + $0xa8] sm:$0xff]
        %v898 = vld [vmem:[%s875 + $0xb0] sm:$0xff]
        %v899 = vld [vmem:[%s875 + $0xb8] sm:$0xff]
        %v900 = vld [vmem:[%s875 + $0xc0] sm:$0xff]
        %v901 = vld [vmem:[%s875 + $0xc8] sm:$0xff]
        %v902 = vld [vmem:[%s875 + $0xd0] sm:$0xff]
        %v903 = vld [vmem:[%s875 + $0xd8] sm:$0xff]
        %v904 = vld [vmem:[%s875 + $0xe0] sm:$0xff]
        %v905 = vld [vmem:[%s875 + $0xe8] sm:$0xff]
        %v906 = vld [vmem:[%s875 + $0xf0] sm:$0xff]
        %v907 = vld [vmem:[%s875 + $0xf8] sm:$0xff]
        %v908 = vmul.f32 %v843, %v876
        %v909 = vmul.f32 %v844, %v877
        %v910 = vmul.f32 %v845, %v878
        %v911 = vmul.f32 %v846, %v879
        %v912 = vmul.f32 %v847, %v880
        %v913 = vmul.f32 %v848, %v881
        %v914 = vmul.f32 %v849, %v882
        %v915 = vmul.f32 %v850, %v883
        %v916 = vmul.f32 %v851, %v884
        %v917 = vmul.f32 %v852, %v885
        %v918 = vmul.f32 %v853, %v886
        %v919 = vmul.f32 %v854, %v887
        %v920 = vmul.f32 %v855, %v888
        %v921 = vmul.f32 %v856, %v889
        %v922 = vmul.f32 %v857, %v890
        %v923 = vmul.f32 %v858, %v891
        %v924 = vmul.f32 %v859, %v892
        %v925 = vmul.f32 %v860, %v893
        %v926 = vmul.f32 %v861, %v894
        %v927 = vmul.f32 %v862, %v895
        %v928 = vmul.f32 %v863, %v896
        %v929 = vmul.f32 %v864, %v897
        %v930 = vmul.f32 %v865, %v898
        %v931 = vmul.f32 %v866, %v899
        %v932 = vmul.f32 %v867, %v900
        %v933 = vmul.f32 %v868, %v901
        %v934 = vmul.f32 %v869, %v902
        %v935 = vmul.f32 %v870, %v903
        %v936 = vmul.f32 %v871, %v904
        %v937 = vmul.f32 %v872, %v905
        %v938 = vmul.f32 %v873, %v906
        %v939 = vmul.f32 %v874, %v907
        %v940 = vadd.f32 %v908, %v909
        %v941 = vadd.f32 %v940, %v910
        %v942 = vadd.f32 %v941, %v911
        %v943 = vadd.f32 %v942, %v912
        %v944 = vadd.f32 %v943, %v913
        %v945 = vadd.f32 %v944, %v914
        %v946 = vadd.f32 %v945, %v915
        %v947 = vadd.f32 %v946, %v916
        %v948 = vadd.f32 %v947, %v917
        %v949 = vadd.f32 %v948, %v918
        %v950 = vadd.f32 %v949, %v919
        %v951 = vadd.f32 %v950, %v920
        %v952 = vadd.f32 %v951, %v921
        %v953 = vadd.f32 %v952, %v922
        %v954 = vadd.f32 %v953, %v923
        %v955 = vadd.f32 %v954, %v924
        %v956 = vadd.f32 %v955, %v925
        %v957 = vadd.f32 %v956, %v926
        %v958 = vadd.f32 %v957, %v927
        %v959 = vadd.f32 %v958, %v928
        %v960 = vadd.f32 %v959, %v929
        %v961 = vadd.f32 %v960, %v930
        %v962 = vadd.f32 %v961, %v931
        %v963 = vadd.f32 %v962, %v932
        %v964 = vadd.f32 %v963, %v933
        %v965 = vadd.f32 %v964, %v934
        %v966 = vadd.f32 %v965, %v935
        %v967 = vadd.f32 %v966, %v936
        %v968 = vadd.f32 %v967, %v937
        %v969 = vadd.f32 %v968, %v938
        %v970 = vadd.f32 %v969, %v939
        %v971 = vadd.f32 %v777, %v970
        %v972 = vadd.f32 %v843, %v876
        %v973 = vadd.f32 %v844, %v877
        %v974 = vadd.f32 %v845, %v878
        %v975 = vadd.f32 %v846, %v879
        %v976 = vadd.f32 %v847, %v880
        %v977 = vadd.f32 %v848, %v881
        %v978 = vadd.f32 %v849, %v882
        %v979 = vadd.f32 %v850, %v883
        %v980 = vadd.f32 %v851, %v884
        %v981 = vadd.f32 %v852, %v885
        %v982 = vadd.f32 %v853, %v886
        %v983 = vadd.f32 %v854, %v887
        %v984 = vadd.f32 %v855, %v888
        %v985 = vadd.f32 %v856, %v889
        %v986 = vadd.f32 %v857, %v890
        %v987 = vadd.f32 %v858, %v891
        %v988 = vadd.f32 %v859, %v892
        %v989 = vadd.f32 %v860, %v893
        %v990 = vadd.f32 %v861, %v894
        %v991 = vadd.f32 %v862, %v895
        %v992 = vadd.f32 %v863, %v896
        %v993 = vadd.f32 %v864, %v897
        %v994 = vadd.f32 %v865, %v898
        %v995 = vadd.f32 %v866, %v899
        %v996 = vadd.f32 %v867, %v900
        %v997 = vadd.f32 %v868, %v901
        %v998 = vadd.f32 %v869, %v902
        %v999 = vadd.f32 %v870, %v903
        %v1000 = vadd.f32 %v871, %v904
        %v1001 = vadd.f32 %v872, %v905
        %v1002 = vadd.f32 %v873, %v906
        %v1003 = vadd.f32 %v874, %v907
        %v1004 = vadd.f32 %v972, %v973
        %v1005 = vadd.f32 %v1004, %v974
        %v1006 = vadd.f32 %v1005, %v975
        %v1007 = vadd.f32 %v1006, %v976
        %v1008 = vadd.f32 %v1007, %v977
        %v1009 = vadd.f32 %v1008, %v978
        %v1010 = vadd.f32 %v1009, %v979
        %v1011 = vadd.f32 %v1010, %v980
        %v1012 = vadd.f32 %v1011, %v981
        %v1013 = vadd.f32 %v1012, %v982
        %v1014 = vadd.f32 %v1013, %v983
        %v1015 = vadd.f32 %v1014, %v984
        %v1016 = vadd.f32 %v1015, %v985
        %v1017 = vadd.f32 %v1016, %v986
        %v1018 = vadd.f32 %v1017, %v987
        %v1019 = vadd.f32 %v1018, %v988
        %v1020 = vadd.f32 %v1019, %v989
        %v1021 = vadd.f32 %v1020, %v990
        %v1022 = vadd.f32 %v1021, %v991
        %v1023 = vadd.f32 %v1022, %v992
        %v1024 = vadd.f32 %v1023, %v993
        %v1025 = vadd.f32 %v1024, %v994
        %v1026 = vadd.f32 %v1025, %v995
        %v1027 = vadd.f32 %v1026, %v996
        %v1028 = vadd.f32 %v1027, %v997
        %v1029 = vadd.f32 %v1028, %v998
        %v1030 = vadd.f32 %v1029, %v999
        %v1031 = vadd.f32 %v1030, %v1000
        %v1032 = vadd.f32 %v1031, %v1001
        %v1033 = vadd.f32 %v1032, %v1002
        %v1034 = vadd.f32 %v1033, %v1003
        %v1035 = vadd.f32 %v841, %v1034
        %s1036 = scalar_lea.vmem %s218, 1024 [#allocation2]
        %v1037 = vld [vmem:[%s1036] sm:$0xff]
        %v1038 = vld [vmem:[%s1036 + $0x8] sm:$0xff]
        %v1039 = vld [vmem:[%s1036 + $0x10] sm:$0xff]
        %v1040 = vld [vmem:[%s1036 + $0x18] sm:$0xff]
        %v1041 = vld [vmem:[%s1036 + $0x20] sm:$0xff]
        %v1042 = vld [vmem:[%s1036 + $0x28] sm:$0xff]
        %v1043 = vld [vmem:[%s1036 + $0x30] sm:$0xff]
        %v1044 = vld [vmem:[%s1036 + $0x38] sm:$0xff]
        %v1045 = vld [vmem:[%s1036 + $0x40] sm:$0xff]
        %v1046 = vld [vmem:[%s1036 + $0x48] sm:$0xff]
        %v1047 = vld [vmem:[%s1036 + $0x50] sm:$0xff]
        %v1048 = vld [vmem:[%s1036 + $0x58] sm:$0xff]
        %v1049 = vld [vmem:[%s1036 + $0x60] sm:$0xff]
        %v1050 = vld [vmem:[%s1036 + $0x68] sm:$0xff]
        %v1051 = vld [vmem:[%s1036 + $0x70] sm:$0xff]
        %v1052 = vld [vmem:[%s1036 + $0x78] sm:$0xff]
        %v1053 = vld [vmem:[%s1036 + $0x80] sm:$0xff]
        %v1054 = vld [vmem:[%s1036 + $0x88] sm:$0xff]
        %v1055 = vld [vmem:[%s1036 + $0x90] sm:$0xff]
        %v1056 = vld [vmem:[%s1036 + $0x98] sm:$0xff]
        %v1057 = vld [vmem:[%s1036 + $0xa0] sm:$0xff]
        %v1058 = vld [vmem:[%s1036 + $0xa8] sm:$0xff]
        %v1059 = vld [vmem:[%s1036 + $0xb0] sm:$0xff]
        %v1060 = vld [vmem:[%s1036 + $0xb8] sm:$0xff]
        %v1061 = vld [vmem:[%s1036 + $0xc0] sm:$0xff]
        %v1062 = vld [vmem:[%s1036 + $0xc8] sm:$0xff]
        %v1063 = vld [vmem:[%s1036 + $0xd0] sm:$0xff]
        %v1064 = vld [vmem:[%s1036 + $0xd8] sm:$0xff]
        %v1065 = vld [vmem:[%s1036 + $0xe0] sm:$0xff]
        %v1066 = vld [vmem:[%s1036 + $0xe8] sm:$0xff]
        %v1067 = vld [vmem:[%s1036 + $0xf0] sm:$0xff]
        %v1068 = vld [vmem:[%s1036 + $0xf8] sm:$0xff]
        %s1069 = scalar_lea.vmem %s227, 1024 [#allocation5]
        %v1070 = vld [vmem:[%s1069] sm:$0xff]
        %v1071 = vld [vmem:[%s1069 + $0x8] sm:$0xff]
        %v1072 = vld [vmem:[%s1069 + $0x10] sm:$0xff]
        %v1073 = vld [vmem:[%s1069 + $0x18] sm:$0xff]
        %v1074 = vld [vmem:[%s1069 + $0x20] sm:$0xff]
        %v1075 = vld [vmem:[%s1069 + $0x28] sm:$0xff]
        %v1076 = vld [vmem:[%s1069 + $0x30] sm:$0xff]
        %v1077 = vld [vmem:[%s1069 + $0x38] sm:$0xff]
        %v1078 = vld [vmem:[%s1069 + $0x40] sm:$0xff]
        %v1079 = vld [vmem:[%s1069 + $0x48] sm:$0xff]
        %v1080 = vld [vmem:[%s1069 + $0x50] sm:$0xff]
        %v1081 = vld [vmem:[%s1069 + $0x58] sm:$0xff]
        %v1082 = vld [vmem:[%s1069 + $0x60] sm:$0xff]
        %v1083 = vld [vmem:[%s1069 + $0x68] sm:$0xff]
        %v1084 = vld [vmem:[%s1069 + $0x70] sm:$0xff]
        %v1085 = vld [vmem:[%s1069 + $0x78] sm:$0xff]
        %v1086 = vld [vmem:[%s1069 + $0x80] sm:$0xff]
        %v1087 = vld [vmem:[%s1069 + $0x88] sm:$0xff]
        %v1088 = vld [vmem:[%s1069 + $0x90] sm:$0xff]
        %v1089 = vld [vmem:[%s1069 + $0x98] sm:$0xff]
        %v1090 = vld [vmem:[%s1069 + $0xa0] sm:$0xff]
        %v1091 = vld [vmem:[%s1069 + $0xa8] sm:$0xff]
        %v1092 = vld [vmem:[%s1069 + $0xb0] sm:$0xff]
        %v1093 = vld [vmem:[%s1069 + $0xb8] sm:$0xff]
        %v1094 = vld [vmem:[%s1069 + $0xc0] sm:$0xff]
        %v1095 = vld [vmem:[%s1069 + $0xc8] sm:$0xff]
        %v1096 = vld [vmem:[%s1069 + $0xd0] sm:$0xff]
        %v1097 = vld [vmem:[%s1069 + $0xd8] sm:$0xff]
        %v1098 = vld [vmem:[%s1069 + $0xe0] sm:$0xff]
        %v1099 = vld [vmem:[%s1069 + $0xe8] sm:$0xff]
        %v1100 = vld [vmem:[%s1069 + $0xf0] sm:$0xff]
        %v1101 = vld [vmem:[%s1069 + $0xf8] sm:$0xff]
        %v1102 = vmul.f32 %v1037, %v1070
        %v1103 = vmul.f32 %v1038, %v1071
        %v1104 = vmul.f32 %v1039, %v1072
        %v1105 = vmul.f32 %v1040, %v1073
        %v1106 = vmul.f32 %v1041, %v1074
        %v1107 = vmul.f32 %v1042, %v1075
        %v1108 = vmul.f32 %v1043, %v1076
        %v1109 = vmul.f32 %v1044, %v1077
        %v1110 = vmul.f32 %v1045, %v1078
        %v1111 = vmul.f32 %v1046, %v1079
        %v1112 = vmul.f32 %v1047, %v1080
        %v1113 = vmul.f32 %v1048, %v1081
        %v1114 = vmul.f32 %v1049, %v1082
        %v1115 = vmul.f32 %v1050, %v1083
        %v1116 = vmul.f32 %v1051, %v1084
        %v1117 = vmul.f32 %v1052, %v1085
        %v1118 = vmul.f32 %v1053, %v1086
        %v1119 = vmul.f32 %v1054, %v1087
        %v1120 = vmul.f32 %v1055, %v1088
        %v1121 = vmul.f32 %v1056, %v1089
        %v1122 = vmul.f32 %v1057, %v1090
        %v1123 = vmul.f32 %v1058, %v1091
        %v1124 = vmul.f32 %v1059, %v1092
        %v1125 = vmul.f32 %v1060, %v1093
        %v1126 = vmul.f32 %v1061, %v1094
        %v1127 = vmul.f32 %v1062, %v1095
        %v1128 = vmul.f32 %v1063, %v1096
        %v1129 = vmul.f32 %v1064, %v1097
        %v1130 = vmul.f32 %v1065, %v1098
        %v1131 = vmul.f32 %v1066, %v1099
        %v1132 = vmul.f32 %v1067, %v1100
        %v1133 = vmul.f32 %v1068, %v1101
        %v1134 = vadd.f32 %v1102, %v1103
        %v1135 = vadd.f32 %v1134, %v1104
        %v1136 = vadd.f32 %v1135, %v1105
        %v1137 = vadd.f32 %v1136, %v1106
        %v1138 = vadd.f32 %v1137, %v1107
        %v1139 = vadd.f32 %v1138, %v1108
        %v1140 = vadd.f32 %v1139, %v1109
        %v1141 = vadd.f32 %v1140, %v1110
        %v1142 = vadd.f32 %v1141, %v1111
        %v1143 = vadd.f32 %v1142, %v1112
        %v1144 = vadd.f32 %v1143, %v1113
        %v1145 = vadd.f32 %v1144, %v1114
        %v1146 = vadd.f32 %v1145, %v1115
        %v1147 = vadd.f32 %v1146, %v1116
        %v1148 = vadd.f32 %v1147, %v1117
        %v1149 = vadd.f32 %v1148, %v1118
        %v1150 = vadd.f32 %v1149, %v1119
        %v1151 = vadd.f32 %v1150, %v1120
        %v1152 = vadd.f32 %v1151, %v1121
        %v1153 = vadd.f32 %v1152, %v1122
        %v1154 = vadd.f32 %v1153, %v1123
        %v1155 = vadd.f32 %v1154, %v1124
        %v1156 = vadd.f32 %v1155, %v1125
        %v1157 = vadd.f32 %v1156, %v1126
        %v1158 = vadd.f32 %v1157, %v1127
        %v1159 = vadd.f32 %v1158, %v1128
        %v1160 = vadd.f32 %v1159, %v1129
        %v1161 = vadd.f32 %v1160, %v1130
        %v1162 = vadd.f32 %v1161, %v1131
        %v1163 = vadd.f32 %v1162, %v1132
        %v1164 = vadd.f32 %v1163, %v1133
        %v1165 = vadd.f32 %v971, %v1164
        %v1166 = vadd.f32 %v1037, %v1070
        %v1167 = vadd.f32 %v1038, %v1071
        %v1168 = vadd.f32 %v1039, %v1072
        %v1169 = vadd.f32 %v1040, %v1073
        %v1170 = vadd.f32 %v1041, %v1074
        %v1171 = vadd.f32 %v1042, %v1075
        %v1172 = vadd.f32 %v1043, %v1076
        %v1173 = vadd.f32 %v1044, %v1077
        %v1174 = vadd.f32 %v1045, %v1078
        %v1175 = vadd.f32 %v1046, %v1079
        %v1176 = vadd.f32 %v1047, %v1080
        %v1177 = vadd.f32 %v1048, %v1081
        %v1178 = vadd.f32 %v1049, %v1082
        %v1179 = vadd.f32 %v1050, %v1083
        %v1180 = vadd.f32 %v1051, %v1084
        %v1181 = vadd.f32 %v1052, %v1085
        %v1182 = vadd.f32 %v1053, %v1086
        %v1183 = vadd.f32 %v1054, %v1087
        %v1184 = vadd.f32 %v1055, %v1088
        %v1185 = vadd.f32 %v1056, %v1089
        %v1186 = vadd.f32 %v1057, %v1090
        %v1187 = vadd.f32 %v1058, %v1091
        %v1188 = vadd.f32 %v1059, %v1092
        %v1189 = vadd.f32 %v1060, %v1093
        %v1190 = vadd.f32 %v1061, %v1094
        %v1191 = vadd.f32 %v1062, %v1095
        %v1192 = vadd.f32 %v1063, %v1096
        %v1193 = vadd.f32 %v1064, %v1097
        %v1194 = vadd.f32 %v1065, %v1098
        %v1195 = vadd.f32 %v1066, %v1099
        %v1196 = vadd.f32 %v1067, %v1100
        %v1197 = vadd.f32 %v1068, %v1101
        %v1198 = vadd.f32 %v1166, %v1167
        %v1199 = vadd.f32 %v1198, %v1168
        %v1200 = vadd.f32 %v1199, %v1169
        %v1201 = vadd.f32 %v1200, %v1170
        %v1202 = vadd.f32 %v1201, %v1171
        %v1203 = vadd.f32 %v1202, %v1172
        %v1204 = vadd.f32 %v1203, %v1173
        %v1205 = vadd.f32 %v1204, %v1174
        %v1206 = vadd.f32 %v1205, %v1175
        %v1207 = vadd.f32 %v1206, %v1176
        %v1208 = vadd.f32 %v1207, %v1177
        %v1209 = vadd.f32 %v1208, %v1178
        %v1210 = vadd.f32 %v1209, %v1179
        %v1211 = vadd.f32 %v1210, %v1180
        %v1212 = vadd.f32 %v1211, %v1181
        %v1213 = vadd.f32 %v1212, %v1182
        %v1214 = vadd.f32 %v1213, %v1183
        %v1215 = vadd.f32 %v1214, %v1184
        %v1216 = vadd.f32 %v1215, %v1185
        %v1217 = vadd.f32 %v1216, %v1186
        %v1218 = vadd.f32 %v1217, %v1187
        %v1219 = vadd.f32 %v1218, %v1188
        %v1220 = vadd.f32 %v1219, %v1189
        %v1221 = vadd.f32 %v1220, %v1190
        %v1222 = vadd.f32 %v1221, %v1191
        %v1223 = vadd.f32 %v1222, %v1192
        %v1224 = vadd.f32 %v1223, %v1193
        %v1225 = vadd.f32 %v1224, %v1194
        %v1226 = vadd.f32 %v1225, %v1195
        %v1227 = vadd.f32 %v1226, %v1196
        %v1228 = vadd.f32 %v1227, %v1197
        %v1229 = vadd.f32 %v1035, %v1228
        %s1230 = scalar_lea.vmem %s218, 1280 [#allocation2]
        %v1231 = vld [vmem:[%s1230] sm:$0xff]
        %v1232 = vld [vmem:[%s1230 + $0x8] sm:$0xff]
        %v1233 = vld [vmem:[%s1230 + $0x10] sm:$0xff]
        %v1234 = vld [vmem:[%s1230 + $0x18] sm:$0xff]
        %v1235 = vld [vmem:[%s1230 + $0x20] sm:$0xff]
        %v1236 = vld [vmem:[%s1230 + $0x28] sm:$0xff]
        %v1237 = vld [vmem:[%s1230 + $0x30] sm:$0xff]
        %v1238 = vld [vmem:[%s1230 + $0x38] sm:$0xff]
        %v1239 = vld [vmem:[%s1230 + $0x40] sm:$0xff]
        %v1240 = vld [vmem:[%s1230 + $0x48] sm:$0xff]
        %v1241 = vld [vmem:[%s1230 + $0x50] sm:$0xff]
        %v1242 = vld [vmem:[%s1230 + $0x58] sm:$0xff]
        %v1243 = vld [vmem:[%s1230 + $0x60] sm:$0xff]
        %v1244 = vld [vmem:[%s1230 + $0x68] sm:$0xff]
        %v1245 = vld [vmem:[%s1230 + $0x70] sm:$0xff]
        %v1246 = vld [vmem:[%s1230 + $0x78] sm:$0xff]
        %v1247 = vld [vmem:[%s1230 + $0x80] sm:$0xff]
        %v1248 = vld [vmem:[%s1230 + $0x88] sm:$0xff]
        %v1249 = vld [vmem:[%s1230 + $0x90] sm:$0xff]
        %v1250 = vld [vmem:[%s1230 + $0x98] sm:$0xff]
        %v1251 = vld [vmem:[%s1230 + $0xa0] sm:$0xff]
        %v1252 = vld [vmem:[%s1230 + $0xa8] sm:$0xff]
        %v1253 = vld [vmem:[%s1230 + $0xb0] sm:$0xff]
        %v1254 = vld [vmem:[%s1230 + $0xb8] sm:$0xff]
        %v1255 = vld [vmem:[%s1230 + $0xc0] sm:$0xff]
        %v1256 = vld [vmem:[%s1230 + $0xc8] sm:$0xff]
        %v1257 = vld [vmem:[%s1230 + $0xd0] sm:$0xff]
        %v1258 = vld [vmem:[%s1230 + $0xd8] sm:$0xff]
        %v1259 = vld [vmem:[%s1230 + $0xe0] sm:$0xff]
        %v1260 = vld [vmem:[%s1230 + $0xe8] sm:$0xff]
        %v1261 = vld [vmem:[%s1230 + $0xf0] sm:$0xff]
        %v1262 = vld [vmem:[%s1230 + $0xf8] sm:$0xff]
        %s1263 = scalar_lea.vmem %s227, 1280 [#allocation5]
        %v1264 = vld [vmem:[%s1263] sm:$0xff]
        %v1265 = vld [vmem:[%s1263 + $0x8] sm:$0xff]
        %v1266 = vld [vmem:[%s1263 + $0x10] sm:$0xff]
        %v1267 = vld [vmem:[%s1263 + $0x18] sm:$0xff]
        %v1268 = vld [vmem:[%s1263 + $0x20] sm:$0xff]
        %v1269 = vld [vmem:[%s1263 + $0x28] sm:$0xff]
        %v1270 = vld [vmem:[%s1263 + $0x30] sm:$0xff]
        %v1271 = vld [vmem:[%s1263 + $0x38] sm:$0xff]
        %v1272 = vld [vmem:[%s1263 + $0x40] sm:$0xff]
        %v1273 = vld [vmem:[%s1263 + $0x48] sm:$0xff]
        %v1274 = vld [vmem:[%s1263 + $0x50] sm:$0xff]
        %v1275 = vld [vmem:[%s1263 + $0x58] sm:$0xff]
        %v1276 = vld [vmem:[%s1263 + $0x60] sm:$0xff]
        %v1277 = vld [vmem:[%s1263 + $0x68] sm:$0xff]
        %v1278 = vld [vmem:[%s1263 + $0x70] sm:$0xff]
        %v1279 = vld [vmem:[%s1263 + $0x78] sm:$0xff]
        %v1280 = vld [vmem:[%s1263 + $0x80] sm:$0xff]
        %v1281 = vld [vmem:[%s1263 + $0x88] sm:$0xff]
        %v1282 = vld [vmem:[%s1263 + $0x90] sm:$0xff]
        %v1283 = vld [vmem:[%s1263 + $0x98] sm:$0xff]
        %v1284 = vld [vmem:[%s1263 + $0xa0] sm:$0xff]
        %v1285 = vld [vmem:[%s1263 + $0xa8] sm:$0xff]
        %v1286 = vld [vmem:[%s1263 + $0xb0] sm:$0xff]
        %v1287 = vld [vmem:[%s1263 + $0xb8] sm:$0xff]
        %v1288 = vld [vmem:[%s1263 + $0xc0] sm:$0xff]
        %v1289 = vld [vmem:[%s1263 + $0xc8] sm:$0xff]
        %v1290 = vld [vmem:[%s1263 + $0xd0] sm:$0xff]
        %v1291 = vld [vmem:[%s1263 + $0xd8] sm:$0xff]
        %v1292 = vld [vmem:[%s1263 + $0xe0] sm:$0xff]
        %v1293 = vld [vmem:[%s1263 + $0xe8] sm:$0xff]
        %v1294 = vld [vmem:[%s1263 + $0xf0] sm:$0xff]
        %v1295 = vld [vmem:[%s1263 + $0xf8] sm:$0xff]
        %v1296 = vmul.f32 %v1231, %v1264
        %v1297 = vmul.f32 %v1232, %v1265
        %v1298 = vmul.f32 %v1233, %v1266
        %v1299 = vmul.f32 %v1234, %v1267
        %v1300 = vmul.f32 %v1235, %v1268
        %v1301 = vmul.f32 %v1236, %v1269
        %v1302 = vmul.f32 %v1237, %v1270
        %v1303 = vmul.f32 %v1238, %v1271
        %v1304 = vmul.f32 %v1239, %v1272
        %v1305 = vmul.f32 %v1240, %v1273
        %v1306 = vmul.f32 %v1241, %v1274
        %v1307 = vmul.f32 %v1242, %v1275
        %v1308 = vmul.f32 %v1243, %v1276
        %v1309 = vmul.f32 %v1244, %v1277
        %v1310 = vmul.f32 %v1245, %v1278
        %v1311 = vmul.f32 %v1246, %v1279
        %v1312 = vmul.f32 %v1247, %v1280
        %v1313 = vmul.f32 %v1248, %v1281
        %v1314 = vmul.f32 %v1249, %v1282
        %v1315 = vmul.f32 %v1250, %v1283
        %v1316 = vmul.f32 %v1251, %v1284
        %v1317 = vmul.f32 %v1252, %v1285
        %v1318 = vmul.f32 %v1253, %v1286
        %v1319 = vmul.f32 %v1254, %v1287
        %v1320 = vmul.f32 %v1255, %v1288
        %v1321 = vmul.f32 %v1256, %v1289
        %v1322 = vmul.f32 %v1257, %v1290
        %v1323 = vmul.f32 %v1258, %v1291
        %v1324 = vmul.f32 %v1259, %v1292
        %v1325 = vmul.f32 %v1260, %v1293
        %v1326 = vmul.f32 %v1261, %v1294
        %v1327 = vmul.f32 %v1262, %v1295
        %v1328 = vadd.f32 %v1296, %v1297
        %v1329 = vadd.f32 %v1328, %v1298
        %v1330 = vadd.f32 %v1329, %v1299
        %v1331 = vadd.f32 %v1330, %v1300
        %v1332 = vadd.f32 %v1331, %v1301
        %v1333 = vadd.f32 %v1332, %v1302
        %v1334 = vadd.f32 %v1333, %v1303
        %v1335 = vadd.f32 %v1334, %v1304
        %v1336 = vadd.f32 %v1335, %v1305
        %v1337 = vadd.f32 %v1336, %v1306
        %v1338 = vadd.f32 %v1337, %v1307
        %v1339 = vadd.f32 %v1338, %v1308
        %v1340 = vadd.f32 %v1339, %v1309
        %v1341 = vadd.f32 %v1340, %v1310
        %v1342 = vadd.f32 %v1341, %v1311
        %v1343 = vadd.f32 %v1342, %v1312
        %v1344 = vadd.f32 %v1343, %v1313
        %v1345 = vadd.f32 %v1344, %v1314
        %v1346 = vadd.f32 %v1345, %v1315
        %v1347 = vadd.f32 %v1346, %v1316
        %v1348 = vadd.f32 %v1347, %v1317
        %v1349 = vadd.f32 %v1348, %v1318
        %v1350 = vadd.f32 %v1349, %v1319
        %v1351 = vadd.f32 %v1350, %v1320
        %v1352 = vadd.f32 %v1351, %v1321
        %v1353 = vadd.f32 %v1352, %v1322
        %v1354 = vadd.f32 %v1353, %v1323
        %v1355 = vadd.f32 %v1354, %v1324
        %v1356 = vadd.f32 %v1355, %v1325
        %v1357 = vadd.f32 %v1356, %v1326
        %v1358 = vadd.f32 %v1357, %v1327
        %v1359 = vadd.f32 %v1165, %v1358
        %v1360 = vadd.f32 %v1231, %v1264
        %v1361 = vadd.f32 %v1232, %v1265
        %v1362 = vadd.f32 %v1233, %v1266
        %v1363 = vadd.f32 %v1234, %v1267
        %v1364 = vadd.f32 %v1235, %v1268
        %v1365 = vadd.f32 %v1236, %v1269
        %v1366 = vadd.f32 %v1237, %v1270
        %v1367 = vadd.f32 %v1238, %v1271
        %v1368 = vadd.f32 %v1239, %v1272
        %v1369 = vadd.f32 %v1240, %v1273
        %v1370 = vadd.f32 %v1241, %v1274
        %v1371 = vadd.f32 %v1242, %v1275
        %v1372 = vadd.f32 %v1243, %v1276
        %v1373 = vadd.f32 %v1244, %v1277
        %v1374 = vadd.f32 %v1245, %v1278
        %v1375 = vadd.f32 %v1246, %v1279
        %v1376 = vadd.f32 %v1247, %v1280
        %v1377 = vadd.f32 %v1248, %v1281
        %v1378 = vadd.f32 %v1249, %v1282
        %v1379 = vadd.f32 %v1250, %v1283
        %v1380 = vadd.f32 %v1251, %v1284
        %v1381 = vadd.f32 %v1252, %v1285
        %v1382 = vadd.f32 %v1253, %v1286
        %v1383 = vadd.f32 %v1254, %v1287
        %v1384 = vadd.f32 %v1255, %v1288
        %v1385 = vadd.f32 %v1256, %v1289
        %v1386 = vadd.f32 %v1257, %v1290
        %v1387 = vadd.f32 %v1258, %v1291
        %v1388 = vadd.f32 %v1259, %v1292
        %v1389 = vadd.f32 %v1260, %v1293
        %v1390 = vadd.f32 %v1261, %v1294
        %v1391 = vadd.f32 %v1262, %v1295
        %v1392 = vadd.f32 %v1360, %v1361
        %v1393 = vadd.f32 %v1392, %v1362
        %v1394 = vadd.f32 %v1393, %v1363
        %v1395 = vadd.f32 %v1394, %v1364
        %v1396 = vadd.f32 %v1395, %v1365
        %v1397 = vadd.f32 %v1396, %v1366
        %v1398 = vadd.f32 %v1397, %v1367
        %v1399 = vadd.f32 %v1398, %v1368
        %v1400 = vadd.f32 %v1399, %v1369
        %v1401 = vadd.f32 %v1400, %v1370
        %v1402 = vadd.f32 %v1401, %v1371
        %v1403 = vadd.f32 %v1402, %v1372
        %v1404 = vadd.f32 %v1403, %v1373
        %v1405 = vadd.f32 %v1404, %v1374
        %v1406 = vadd.f32 %v1405, %v1375
        %v1407 = vadd.f32 %v1406, %v1376
        %v1408 = vadd.f32 %v1407, %v1377
        %v1409 = vadd.f32 %v1408, %v1378
        %v1410 = vadd.f32 %v1409, %v1379
        %v1411 = vadd.f32 %v1410, %v1380
        %v1412 = vadd.f32 %v1411, %v1381
        %v1413 = vadd.f32 %v1412, %v1382
        %v1414 = vadd.f32 %v1413, %v1383
        %v1415 = vadd.f32 %v1414, %v1384
        %v1416 = vadd.f32 %v1415, %v1385
        %v1417 = vadd.f32 %v1416, %v1386
        %v1418 = vadd.f32 %v1417, %v1387
        %v1419 = vadd.f32 %v1418, %v1388
        %v1420 = vadd.f32 %v1419, %v1389
        %v1421 = vadd.f32 %v1420, %v1390
        %v1422 = vadd.f32 %v1421, %v1391
        %v1423 = vadd.f32 %v1229, %v1422
        %s1424 = scalar_lea.vmem %s218, 1536 [#allocation2]
        %v1425 = vld [vmem:[%s1424] sm:$0xff]
        %v1426 = vld [vmem:[%s1424 + $0x8] sm:$0xff]
        %v1427 = vld [vmem:[%s1424 + $0x10] sm:$0xff]
        %v1428 = vld [vmem:[%s1424 + $0x18] sm:$0xff]
        %v1429 = vld [vmem:[%s1424 + $0x20] sm:$0xff]
        %v1430 = vld [vmem:[%s1424 + $0x28] sm:$0xff]
        %v1431 = vld [vmem:[%s1424 + $0x30] sm:$0xff]
        %v1432 = vld [vmem:[%s1424 + $0x38] sm:$0xff]
        %v1433 = vld [vmem:[%s1424 + $0x40] sm:$0xff]
        %v1434 = vld [vmem:[%s1424 + $0x48] sm:$0xff]
        %v1435 = vld [vmem:[%s1424 + $0x50] sm:$0xff]
        %v1436 = vld [vmem:[%s1424 + $0x58] sm:$0xff]
        %v1437 = vld [vmem:[%s1424 + $0x60] sm:$0xff]
        %v1438 = vld [vmem:[%s1424 + $0x68] sm:$0xff]
        %v1439 = vld [vmem:[%s1424 + $0x70] sm:$0xff]
        %v1440 = vld [vmem:[%s1424 + $0x78] sm:$0xff]
        %v1441 = vld [vmem:[%s1424 + $0x80] sm:$0xff]
        %v1442 = vld [vmem:[%s1424 + $0x88] sm:$0xff]
        %v1443 = vld [vmem:[%s1424 + $0x90] sm:$0xff]
        %v1444 = vld [vmem:[%s1424 + $0x98] sm:$0xff]
        %v1445 = vld [vmem:[%s1424 + $0xa0] sm:$0xff]
        %v1446 = vld [vmem:[%s1424 + $0xa8] sm:$0xff]
        %v1447 = vld [vmem:[%s1424 + $0xb0] sm:$0xff]
        %v1448 = vld [vmem:[%s1424 + $0xb8] sm:$0xff]
        %v1449 = vld [vmem:[%s1424 + $0xc0] sm:$0xff]
        %v1450 = vld [vmem:[%s1424 + $0xc8] sm:$0xff]
        %v1451 = vld [vmem:[%s1424 + $0xd0] sm:$0xff]
        %v1452 = vld [vmem:[%s1424 + $0xd8] sm:$0xff]
        %v1453 = vld [vmem:[%s1424 + $0xe0] sm:$0xff]
        %v1454 = vld [vmem:[%s1424 + $0xe8] sm:$0xff]
        %v1455 = vld [vmem:[%s1424 + $0xf0] sm:$0xff]
        %v1456 = vld [vmem:[%s1424 + $0xf8] sm:$0xff]
        %s1457 = scalar_lea.vmem %s227, 1536 [#allocation5]
        %v1458 = vld [vmem:[%s1457] sm:$0xff]
        %v1459 = vld [vmem:[%s1457 + $0x8] sm:$0xff]
        %v1460 = vld [vmem:[%s1457 + $0x10] sm:$0xff]
        %v1461 = vld [vmem:[%s1457 + $0x18] sm:$0xff]
        %v1462 = vld [vmem:[%s1457 + $0x20] sm:$0xff]
        %v1463 = vld [vmem:[%s1457 + $0x28] sm:$0xff]
        %v1464 = vld [vmem:[%s1457 + $0x30] sm:$0xff]
        %v1465 = vld [vmem:[%s1457 + $0x38] sm:$0xff]
        %v1466 = vld [vmem:[%s1457 + $0x40] sm:$0xff]
        %v1467 = vld [vmem:[%s1457 + $0x48] sm:$0xff]
        %v1468 = vld [vmem:[%s1457 + $0x50] sm:$0xff]
        %v1469 = vld [vmem:[%s1457 + $0x58] sm:$0xff]
        %v1470 = vld [vmem:[%s1457 + $0x60] sm:$0xff]
        %v1471 = vld [vmem:[%s1457 + $0x68] sm:$0xff]
        %v1472 = vld [vmem:[%s1457 + $0x70] sm:$0xff]
        %v1473 = vld [vmem:[%s1457 + $0x78] sm:$0xff]
        %v1474 = vld [vmem:[%s1457 + $0x80] sm:$0xff]
        %v1475 = vld [vmem:[%s1457 + $0x88] sm:$0xff]
        %v1476 = vld [vmem:[%s1457 + $0x90] sm:$0xff]
        %v1477 = vld [vmem:[%s1457 + $0x98] sm:$0xff]
        %v1478 = vld [vmem:[%s1457 + $0xa0] sm:$0xff]
        %v1479 = vld [vmem:[%s1457 + $0xa8] sm:$0xff]
        %v1480 = vld [vmem:[%s1457 + $0xb0] sm:$0xff]
        %v1481 = vld [vmem:[%s1457 + $0xb8] sm:$0xff]
        %v1482 = vld [vmem:[%s1457 + $0xc0] sm:$0xff]
        %v1483 = vld [vmem:[%s1457 + $0xc8] sm:$0xff]
        %v1484 = vld [vmem:[%s1457 + $0xd0] sm:$0xff]
        %v1485 = vld [vmem:[%s1457 + $0xd8] sm:$0xff]
        %v1486 = vld [vmem:[%s1457 + $0xe0] sm:$0xff]
        %v1487 = vld [vmem:[%s1457 + $0xe8] sm:$0xff]
        %v1488 = vld [vmem:[%s1457 + $0xf0] sm:$0xff]
        %v1489 = vld [vmem:[%s1457 + $0xf8] sm:$0xff]
        %v1490 = vmul.f32 %v1425, %v1458
        %v1491 = vmul.f32 %v1426, %v1459
        %v1492 = vmul.f32 %v1427, %v1460
        %v1493 = vmul.f32 %v1428, %v1461
        %v1494 = vmul.f32 %v1429, %v1462
        %v1495 = vmul.f32 %v1430, %v1463
        %v1496 = vmul.f32 %v1431, %v1464
        %v1497 = vmul.f32 %v1432, %v1465
        %v1498 = vmul.f32 %v1433, %v1466
        %v1499 = vmul.f32 %v1434, %v1467
        %v1500 = vmul.f32 %v1435, %v1468
        %v1501 = vmul.f32 %v1436, %v1469
        %v1502 = vmul.f32 %v1437, %v1470
        %v1503 = vmul.f32 %v1438, %v1471
        %v1504 = vmul.f32 %v1439, %v1472
        %v1505 = vmul.f32 %v1440, %v1473
        %v1506 = vmul.f32 %v1441, %v1474
        %v1507 = vmul.f32 %v1442, %v1475
        %v1508 = vmul.f32 %v1443, %v1476
        %v1509 = vmul.f32 %v1444, %v1477
        %v1510 = vmul.f32 %v1445, %v1478
        %v1511 = vmul.f32 %v1446, %v1479
        %v1512 = vmul.f32 %v1447, %v1480
        %v1513 = vmul.f32 %v1448, %v1481
        %v1514 = vmul.f32 %v1449, %v1482
        %v1515 = vmul.f32 %v1450, %v1483
        %v1516 = vmul.f32 %v1451, %v1484
        %v1517 = vmul.f32 %v1452, %v1485
        %v1518 = vmul.f32 %v1453, %v1486
        %v1519 = vmul.f32 %v1454, %v1487
        %v1520 = vmul.f32 %v1455, %v1488
        %v1521 = vmul.f32 %v1456, %v1489
        %v1522 = vadd.f32 %v1490, %v1491
        %v1523 = vadd.f32 %v1522, %v1492
        %v1524 = vadd.f32 %v1523, %v1493
        %v1525 = vadd.f32 %v1524, %v1494
        %v1526 = vadd.f32 %v1525, %v1495
        %v1527 = vadd.f32 %v1526, %v1496
        %v1528 = vadd.f32 %v1527, %v1497
        %v1529 = vadd.f32 %v1528, %v1498
        %v1530 = vadd.f32 %v1529, %v1499
        %v1531 = vadd.f32 %v1530, %v1500
        %v1532 = vadd.f32 %v1531, %v1501
        %v1533 = vadd.f32 %v1532, %v1502
        %v1534 = vadd.f32 %v1533, %v1503
        %v1535 = vadd.f32 %v1534, %v1504
        %v1536 = vadd.f32 %v1535, %v1505
        %v1537 = vadd.f32 %v1536, %v1506
        %v1538 = vadd.f32 %v1537, %v1507
        %v1539 = vadd.f32 %v1538, %v1508
        %v1540 = vadd.f32 %v1539, %v1509
        %v1541 = vadd.f32 %v1540, %v1510
        %v1542 = vadd.f32 %v1541, %v1511
        %v1543 = vadd.f32 %v1542, %v1512
        %v1544 = vadd.f32 %v1543, %v1513
        %v1545 = vadd.f32 %v1544, %v1514
        %v1546 = vadd.f32 %v1545, %v1515
        %v1547 = vadd.f32 %v1546, %v1516
        %v1548 = vadd.f32 %v1547, %v1517
        %v1549 = vadd.f32 %v1548, %v1518
        %v1550 = vadd.f32 %v1549, %v1519
        %v1551 = vadd.f32 %v1550, %v1520
        %v1552 = vadd.f32 %v1551, %v1521
        %v1553 = vadd.f32 %v1359, %v1552
        %v1554 = vadd.f32 %v1425, %v1458
        %v1555 = vadd.f32 %v1426, %v1459
        %v1556 = vadd.f32 %v1427, %v1460
        %v1557 = vadd.f32 %v1428, %v1461
        %v1558 = vadd.f32 %v1429, %v1462
        %v1559 = vadd.f32 %v1430, %v1463
        %v1560 = vadd.f32 %v1431, %v1464
        %v1561 = vadd.f32 %v1432, %v1465
        %v1562 = vadd.f32 %v1433, %v1466
        %v1563 = vadd.f32 %v1434, %v1467
        %v1564 = vadd.f32 %v1435, %v1468
        %v1565 = vadd.f32 %v1436, %v1469
        %v1566 = vadd.f32 %v1437, %v1470
        %v1567 = vadd.f32 %v1438, %v1471
        %v1568 = vadd.f32 %v1439, %v1472
        %v1569 = vadd.f32 %v1440, %v1473
        %v1570 = vadd.f32 %v1441, %v1474
        %v1571 = vadd.f32 %v1442, %v1475
        %v1572 = vadd.f32 %v1443, %v1476
        %v1573 = vadd.f32 %v1444, %v1477
        %v1574 = vadd.f32 %v1445, %v1478
        %v1575 = vadd.f32 %v1446, %v1479
        %v1576 = vadd.f32 %v1447, %v1480
        %v1577 = vadd.f32 %v1448, %v1481
        %v1578 = vadd.f32 %v1449, %v1482
        %v1579 = vadd.f32 %v1450, %v1483
        %v1580 = vadd.f32 %v1451, %v1484
        %v1581 = vadd.f32 %v1452, %v1485
        %v1582 = vadd.f32 %v1453, %v1486
        %v1583 = vadd.f32 %v1454, %v1487
        %v1584 = vadd.f32 %v1455, %v1488
        %v1585 = vadd.f32 %v1456, %v1489
        %v1586 = vadd.f32 %v1554, %v1555
        %v1587 = vadd.f32 %v1586, %v1556
        %v1588 = vadd.f32 %v1587, %v1557
        %v1589 = vadd.f32 %v1588, %v1558
        %v1590 = vadd.f32 %v1589, %v1559
        %v1591 = vadd.f32 %v1590, %v1560
        %v1592 = vadd.f32 %v1591, %v1561
        %v1593 = vadd.f32 %v1592, %v1562
        %v1594 = vadd.f32 %v1593, %v1563
        %v1595 = vadd.f32 %v1594, %v1564
        %v1596 = vadd.f32 %v1595, %v1565
        %v1597 = vadd.f32 %v1596, %v1566
        %v1598 = vadd.f32 %v1597, %v1567
        %v1599 = vadd.f32 %v1598, %v1568
        %v1600 = vadd.f32 %v1599, %v1569
        %v1601 = vadd.f32 %v1600, %v1570
        %v1602 = vadd.f32 %v1601, %v1571
        %v1603 = vadd.f32 %v1602, %v1572
        %v1604 = vadd.f32 %v1603, %v1573
        %v1605 = vadd.f32 %v1604, %v1574
        %v1606 = vadd.f32 %v1605, %v1575
        %v1607 = vadd.f32 %v1606, %v1576
        %v1608 = vadd.f32 %v1607, %v1577
        %v1609 = vadd.f32 %v1608, %v1578
        %v1610 = vadd.f32 %v1609, %v1579
        %v1611 = vadd.f32 %v1610, %v1580
        %v1612 = vadd.f32 %v1611, %v1581
        %v1613 = vadd.f32 %v1612, %v1582
        %v1614 = vadd.f32 %v1613, %v1583
        %v1615 = vadd.f32 %v1614, %v1584
        %v1616 = vadd.f32 %v1615, %v1585
        %v1617 = vadd.f32 %v1423, %v1616
        %s1618 = scalar_lea.vmem %s218, 1792 [#allocation2]
        %v1619 = vld [vmem:[%s1618] sm:$0xff]
        %v1620 = vld [vmem:[%s1618 + $0x8] sm:$0xff]
        %v1621 = vld [vmem:[%s1618 + $0x10] sm:$0xff]
        %v1622 = vld [vmem:[%s1618 + $0x18] sm:$0xff]
        %v1623 = vld [vmem:[%s1618 + $0x20] sm:$0xff]
        %v1624 = vld [vmem:[%s1618 + $0x28] sm:$0xff]
        %v1625 = vld [vmem:[%s1618 + $0x30] sm:$0xff]
        %v1626 = vld [vmem:[%s1618 + $0x38] sm:$0xff]
        %v1627 = vld [vmem:[%s1618 + $0x40] sm:$0xff]
        %v1628 = vld [vmem:[%s1618 + $0x48] sm:$0xff]
        %v1629 = vld [vmem:[%s1618 + $0x50] sm:$0xff]
        %v1630 = vld [vmem:[%s1618 + $0x58] sm:$0xff]
        %v1631 = vld [vmem:[%s1618 + $0x60] sm:$0xff]
        %v1632 = vld [vmem:[%s1618 + $0x68] sm:$0xff]
        %v1633 = vld [vmem:[%s1618 + $0x70] sm:$0xff]
        %v1634 = vld [vmem:[%s1618 + $0x78] sm:$0xff]
        %v1635 = vld [vmem:[%s1618 + $0x80] sm:$0xff]
        %v1636 = vld [vmem:[%s1618 + $0x88] sm:$0xff]
        %v1637 = vld [vmem:[%s1618 + $0x90] sm:$0xff]
        %v1638 = vld [vmem:[%s1618 + $0x98] sm:$0xff]
        %v1639 = vld [vmem:[%s1618 + $0xa0] sm:$0xff]
        %v1640 = vld [vmem:[%s1618 + $0xa8] sm:$0xff]
        %v1641 = vld [vmem:[%s1618 + $0xb0] sm:$0xff]
        %v1642 = vld [vmem:[%s1618 + $0xb8] sm:$0xff]
        %v1643 = vld [vmem:[%s1618 + $0xc0] sm:$0xff]
        %v1644 = vld [vmem:[%s1618 + $0xc8] sm:$0xff]
        %v1645 = vld [vmem:[%s1618 + $0xd0] sm:$0xff]
        %v1646 = vld [vmem:[%s1618 + $0xd8] sm:$0xff]
        %v1647 = vld [vmem:[%s1618 + $0xe0] sm:$0xff]
        %v1648 = vld [vmem:[%s1618 + $0xe8] sm:$0xff]
        %v1649 = vld [vmem:[%s1618 + $0xf0] sm:$0xff]
        %v1650 = vld [vmem:[%s1618 + $0xf8] sm:$0xff]
        %s1651 = scalar_lea.vmem %s227, 1792 [#allocation5]
        %v1652 = vld [vmem:[%s1651] sm:$0xff]
        %v1653 = vld [vmem:[%s1651 + $0x8] sm:$0xff]
        %v1654 = vld [vmem:[%s1651 + $0x10] sm:$0xff]
        %v1655 = vld [vmem:[%s1651 + $0x18] sm:$0xff]
        %v1656 = vld [vmem:[%s1651 + $0x20] sm:$0xff]
        %v1657 = vld [vmem:[%s1651 + $0x28] sm:$0xff]
        %v1658 = vld [vmem:[%s1651 + $0x30] sm:$0xff]
        %v1659 = vld [vmem:[%s1651 + $0x38] sm:$0xff]
        %v1660 = vld [vmem:[%s1651 + $0x40] sm:$0xff]
        %v1661 = vld [vmem:[%s1651 + $0x48] sm:$0xff]
        %v1662 = vld [vmem:[%s1651 + $0x50] sm:$0xff]
        %v1663 = vld [vmem:[%s1651 + $0x58] sm:$0xff]
        %v1664 = vld [vmem:[%s1651 + $0x60] sm:$0xff]
        %v1665 = vld [vmem:[%s1651 + $0x68] sm:$0xff]
        %v1666 = vld [vmem:[%s1651 + $0x70] sm:$0xff]
        %v1667 = vld [vmem:[%s1651 + $0x78] sm:$0xff]
        %v1668 = vld [vmem:[%s1651 + $0x80] sm:$0xff]
        %v1669 = vld [vmem:[%s1651 + $0x88] sm:$0xff]
        %v1670 = vld [vmem:[%s1651 + $0x90] sm:$0xff]
        %v1671 = vld [vmem:[%s1651 + $0x98] sm:$0xff]
        %v1672 = vld [vmem:[%s1651 + $0xa0] sm:$0xff]
        %v1673 = vld [vmem:[%s1651 + $0xa8] sm:$0xff]
        %v1674 = vld [vmem:[%s1651 + $0xb0] sm:$0xff]
        %v1675 = vld [vmem:[%s1651 + $0xb8] sm:$0xff]
        %v1676 = vld [vmem:[%s1651 + $0xc0] sm:$0xff]
        %v1677 = vld [vmem:[%s1651 + $0xc8] sm:$0xff]
        %v1678 = vld [vmem:[%s1651 + $0xd0] sm:$0xff]
        %v1679 = vld [vmem:[%s1651 + $0xd8] sm:$0xff]
        %v1680 = vld [vmem:[%s1651 + $0xe0] sm:$0xff]
        %v1681 = vld [vmem:[%s1651 + $0xe8] sm:$0xff]
        %v1682 = vld [vmem:[%s1651 + $0xf0] sm:$0xff]
        %v1683 = vld [vmem:[%s1651 + $0xf8] sm:$0xff]
        %v1684 = vmul.f32 %v1619, %v1652
        %v1685 = vmul.f32 %v1620, %v1653
        %v1686 = vmul.f32 %v1621, %v1654
        %v1687 = vmul.f32 %v1622, %v1655
        %v1688 = vmul.f32 %v1623, %v1656
        %v1689 = vmul.f32 %v1624, %v1657
        %v1690 = vmul.f32 %v1625, %v1658
        %v1691 = vmul.f32 %v1626, %v1659
        %v1692 = vmul.f32 %v1627, %v1660
        %v1693 = vmul.f32 %v1628, %v1661
        %v1694 = vmul.f32 %v1629, %v1662
        %v1695 = vmul.f32 %v1630, %v1663
        %v1696 = vmul.f32 %v1631, %v1664
        %v1697 = vmul.f32 %v1632, %v1665
        %v1698 = vmul.f32 %v1633, %v1666
        %v1699 = vmul.f32 %v1634, %v1667
        %v1700 = vmul.f32 %v1635, %v1668
        %v1701 = vmul.f32 %v1636, %v1669
        %v1702 = vmul.f32 %v1637, %v1670
        %v1703 = vmul.f32 %v1638, %v1671
        %v1704 = vmul.f32 %v1639, %v1672
        %v1705 = vmul.f32 %v1640, %v1673
        %v1706 = vmul.f32 %v1641, %v1674
        %v1707 = vmul.f32 %v1642, %v1675
        %v1708 = vmul.f32 %v1643, %v1676
        %v1709 = vmul.f32 %v1644, %v1677
        %v1710 = vmul.f32 %v1645, %v1678
        %v1711 = vmul.f32 %v1646, %v1679
        %v1712 = vmul.f32 %v1647, %v1680
        %v1713 = vmul.f32 %v1648, %v1681
        %v1714 = vmul.f32 %v1649, %v1682
        %v1715 = vmul.f32 %v1650, %v1683
        %v1716 = vadd.f32 %v1684, %v1685
        %v1717 = vadd.f32 %v1716, %v1686
        %v1718 = vadd.f32 %v1717, %v1687
        %v1719 = vadd.f32 %v1718, %v1688
        %v1720 = vadd.f32 %v1719, %v1689
        %v1721 = vadd.f32 %v1720, %v1690
        %v1722 = vadd.f32 %v1721, %v1691
        %v1723 = vadd.f32 %v1722, %v1692
        %v1724 = vadd.f32 %v1723, %v1693
        %v1725 = vadd.f32 %v1724, %v1694
        %v1726 = vadd.f32 %v1725, %v1695
        %v1727 = vadd.f32 %v1726, %v1696
        %v1728 = vadd.f32 %v1727, %v1697
        %v1729 = vadd.f32 %v1728, %v1698
        %v1730 = vadd.f32 %v1729, %v1699
        %v1731 = vadd.f32 %v1730, %v1700
        %v1732 = vadd.f32 %v1731, %v1701
        %v1733 = vadd.f32 %v1732, %v1702
        %v1734 = vadd.f32 %v1733, %v1703
        %v1735 = vadd.f32 %v1734, %v1704
        %v1736 = vadd.f32 %v1735, %v1705
        %v1737 = vadd.f32 %v1736, %v1706
        %v1738 = vadd.f32 %v1737, %v1707
        %v1739 = vadd.f32 %v1738, %v1708
        %v1740 = vadd.f32 %v1739, %v1709
        %v1741 = vadd.f32 %v1740, %v1710
        %v1742 = vadd.f32 %v1741, %v1711
        %v1743 = vadd.f32 %v1742, %v1712
        %v1744 = vadd.f32 %v1743, %v1713
        %v1745 = vadd.f32 %v1744, %v1714
        %v1746 = vadd.f32 %v1745, %v1715
        %v1747 = vadd.f32 %v1553, %v1746
        %v1748 = vadd.f32 %v1619, %v1652
        %v1749 = vadd.f32 %v1620, %v1653
        %v1750 = vadd.f32 %v1621, %v1654
        %v1751 = vadd.f32 %v1622, %v1655
        %v1752 = vadd.f32 %v1623, %v1656
        %v1753 = vadd.f32 %v1624, %v1657
        %v1754 = vadd.f32 %v1625, %v1658
        %v1755 = vadd.f32 %v1626, %v1659
        %v1756 = vadd.f32 %v1627, %v1660
        %v1757 = vadd.f32 %v1628, %v1661
        %v1758 = vadd.f32 %v1629, %v1662
        %v1759 = vadd.f32 %v1630, %v1663
        %v1760 = vadd.f32 %v1631, %v1664
        %v1761 = vadd.f32 %v1632, %v1665
        %v1762 = vadd.f32 %v1633, %v1666
        %v1763 = vadd.f32 %v1634, %v1667
        %v1764 = vadd.f32 %v1635, %v1668
        %v1765 = vadd.f32 %v1636, %v1669
        %v1766 = vadd.f32 %v1637, %v1670
        %v1767 = vadd.f32 %v1638, %v1671
        %v1768 = vadd.f32 %v1639, %v1672
        %v1769 = vadd.f32 %v1640, %v1673
        %v1770 = vadd.f32 %v1641, %v1674
        %v1771 = vadd.f32 %v1642, %v1675
        %v1772 = vadd.f32 %v1643, %v1676
        %v1773 = vadd.f32 %v1644, %v1677
        %v1774 = vadd.f32 %v1645, %v1678
        %v1775 = vadd.f32 %v1646, %v1679
        %v1776 = vadd.f32 %v1647, %v1680
        %v1777 = vadd.f32 %v1648, %v1681
        %v1778 = vadd.f32 %v1649, %v1682
        %v1779 = vadd.f32 %v1650, %v1683
        %v1780 = vadd.f32 %v1748, %v1749
        %v1781 = vadd.f32 %v1780, %v1750
        %v1782 = vadd.f32 %v1781, %v1751
        %v1783 = vadd.f32 %v1782, %v1752
        %v1784 = vadd.f32 %v1783, %v1753
        %v1785 = vadd.f32 %v1784, %v1754
        %v1786 = vadd.f32 %v1785, %v1755
        %v1787 = vadd.f32 %v1786, %v1756
        %v1788 = vadd.f32 %v1787, %v1757
        %v1789 = vadd.f32 %v1788, %v1758
        %v1790 = vadd.f32 %v1789, %v1759
        %v1791 = vadd.f32 %v1790, %v1760
        %v1792 = vadd.f32 %v1791, %v1761
        %v1793 = vadd.f32 %v1792, %v1762
        %v1794 = vadd.f32 %v1793, %v1763
        %v1795 = vadd.f32 %v1794, %v1764
        %v1796 = vadd.f32 %v1795, %v1765
        %v1797 = vadd.f32 %v1796, %v1766
        %v1798 = vadd.f32 %v1797, %v1767
        %v1799 = vadd.f32 %v1798, %v1768
        %v1800 = vadd.f32 %v1799, %v1769
        %v1801 = vadd.f32 %v1800, %v1770
        %v1802 = vadd.f32 %v1801, %v1771
        %v1803 = vadd.f32 %v1802, %v1772
        %v1804 = vadd.f32 %v1803, %v1773
        %v1805 = vadd.f32 %v1804, %v1774
        %v1806 = vadd.f32 %v1805, %v1775
        %v1807 = vadd.f32 %v1806, %v1776
        %v1808 = vadd.f32 %v1807, %v1777
        %v1809 = vadd.f32 %v1808, %v1778
        %v1810 = vadd.f32 %v1809, %v1779
        %v1811 = vadd.f32 %v1617, %v1810
        %v1812 = vld [vmem:[#allocation7] sm:$0xff]
        %v1813 = vadd.f32 %v1812, %v1747
        %1814 = vst [vmem:[#allocation7] sm:$0xff] %v1813
        %v1815 = vld [vmem:[#allocation8] sm:$0xff]
        %v1816 = vadd.f32 %v1815, %v1811
        %1817 = vst [vmem:[#allocation8] sm:$0xff] %v1816
        // Predicated region
        $region41: #{tpu_custom_call.1} parent=27 // pred_check
          %p1818 = pneg %p113
        $region42: #{tpu_custom_call.1} parent=27 // pred_check_branch
          %1820 = sbr.rel (%p1818) target = $region44
        $region43: #{tpu_custom_call.1} parent=27 // pred_region
          %s1822 = ssub.s32 128, 128
          %1823 = vsyncadd [#allocation4], %s1822
          %s1824 = smul.addr %s27, 128
          %s1825 = scalar_lea.hbm %s2, %s1824
          %s1827 = sshll.u32 [#allocation7], 4
          %s1828 = int_to_ptr.vmem [resolvable:$true] %s1827
          %1830 = dma.vmem_to_hbm [thread:$0]  %s1828, 128, %s1825, [#allocation4]
        $region44: #{tpu_custom_call.1} parent=27 // pred_fallthru
          _
        // Predicated region
        $region45: #{tpu_custom_call.1} parent=27 // pred_check
          %p1831 = pneg %p139
        $region46: #{tpu_custom_call.1} parent=27 // pred_check_branch
          %1833 = sbr.rel (%p1831) target = $region48
        $region47: #{tpu_custom_call.1} parent=27 // pred_region
          %s1835 = ssub.s32 128, 128
          %1836 = vsyncadd [#allocation9], %s1835
          %s1837 = smul.addr %s27, 128
          %s1838 = scalar_lea.hbm %s3, %s1837
          %s1840 = sshll.u32 [#allocation8], 4
          %s1841 = int_to_ptr.vmem [resolvable:$true] %s1840
          %1843 = dma.vmem_to_hbm [thread:$0]  %s1841, 128, %s1838, [#allocation9]
        $region48: #{tpu_custom_call.1} parent=27 // pred_fallthru
          _
        // Predicated region
        $region49: #{tpu_custom_call.1} parent=27 // pred_check
          %p1844 = pneg %p113
        $region50: #{tpu_custom_call.1} parent=27 // pred_check_branch
          %1846 = sbr.rel (%p1844) target = $region52
        $region51: #{tpu_custom_call.1} parent=27 // pred_region
          %1847 = dma.done [#allocation4], 128
        $region52: #{tpu_custom_call.1} parent=27 // pred_fallthru
          _
        // Predicated region
        $region53: #{tpu_custom_call.1} parent=27 // pred_check
          %p1848 = pneg %p139
        $region54: #{tpu_custom_call.1} parent=27 // pred_check_branch
          %1850 = sbr.rel (%p1848) target = $region56
        $region55: #{tpu_custom_call.1} parent=27 // pred_region
          %1851 = dma.done [#allocation9], 128
        $region56: #{tpu_custom_call.1} parent=27 // pred_fallthru
          _
      $region28: #{tpu_custom_call.1} parent=5 // pred_fallthru
        _
      %p1852 = scmp.le.s32.totalorder 2, %s18
      // Predicated region
      $region57: #{tpu_custom_call.1} parent=5 // pred_check
        %p1853 = pneg %p1852
      $region58: #{tpu_custom_call.1} parent=5 // pred_check_branch
        %1855 = sbr.rel (%p1853) target = $region60
      $region59: #{tpu_custom_call.1} parent=5 // pred_region
        %s1856 = ssub.s32 %s18, 2
      $region60: #{tpu_custom_call.1} parent=5 // pred_fallthru
        _
    $region6: #{tpu_custom_call.1} parent=1 // loop_footer
      %s22 = sadd.s32 1, %s18
    $region7: #{tpu_custom_call.1} parent=1 // loop_footer_branch
      %17 = sbr.rel target = $region3
    $region8: #{tpu_custom_call.1} parent=1 // loop_exit
      _
    %1857 = vsyncpa [#allocation3], 1
    %s1858 = scalar_lea.sflag [#allocation3], 1
    %1859 = vsyncpa %s1858, 1
    %1860 = vsyncpa [#allocation6], 1
    %s1861 = scalar_lea.sflag [#allocation6], 1
    %1862 = vsyncpa %s1861, 1
    %1863 = vsyncpa [#allocation4], 1
    %s1864 = scalar_lea.sflag [#allocation4], 1
    %1865 = vsyncpa %s1864, 1
    %1866 = vsyncpa [#allocation9], 1

</llo_original>
